<compile_context>
chip_gen: v7x
topology: tpu7x:2x2x1
jax: 0.10.0
libtpu: 0.0.40
codegen_flags: <defaults>
</compile_context>

<pallas_src>
import functools

import jax
import jax.numpy as jnp
from jax.experimental import pallas as pl
from jax.experimental.pallas import tpu as pltpu


_NEG_BIG = -1e30  # large finite negative used to disable padded / masked keys


def _round_up(x, n):
    return ((x + n - 1) // n) * n


def _make_flash_kernel(has_mask, n_pad_keys, mxu_dtype, exp_dtype):
    """Flash-attention-style kernel (online softmax over key blocks)."""

    def kernel(*refs):
        if has_mask:
            q_ref, kt_ref, v_ref, m_ref, o_ref, q_sc, m_sc, l_sc, acc_sc = refs
        else:
            q_ref, kt_ref, v_ref, o_ref, q_sc, m_sc, l_sc, acc_sc = refs
            m_ref = None

        j = pl.program_id(1)  # key-block index (last grid axis, "arbitrary")
        last_j = pl.num_programs(1) - 1

        @pl.when(j == 0)
        def _init():
            d = q_ref.shape[-1]
            scale = float(d) ** -0.5
            # Stage the scaled, MXU-dtype Q tile once per query block; it is
            # reused unchanged for every key block (hoists the per-step
            # scale + casts out of the key loop).
            q_sc[...] = (q_ref[...].astype(jnp.float32) * scale).astype(q_sc.dtype)
            # Finite init (not -inf): tolerates -inf entries in a user mask.
            m_sc[...] = jnp.full_like(m_sc, _NEG_BIG)
            l_sc[...] = jnp.zeros_like(l_sc)
            acc_sc[...] = jnp.zeros_like(acc_sc)

        # (tq, d) @ (d, tk): lane-dense K^T tile, native MXU orientation,
        # f32 accumulation.
        s = jnp.dot(
            q_sc[...],
            kt_ref[...].astype(mxu_dtype),
            preferred_element_type=jnp.float32,
        )
        if has_mask:
            s = s + m_ref[...].astype(jnp.float32)

        # Online softmax with deferred normalization (accumulation in f32).
        m_prev = m_sc[...]
        m_new = jnp.maximum(m_prev, jnp.max(s, axis=-1, keepdims=True))
        alpha = jnp.exp(m_prev - m_new)
        # Large per-tile exp in exp_dtype (bf16 on the fast path: v6e/v7x EUP).
        p = jnp.exp((s - m_new).astype(exp_dtype))
        l_sc[...] = alpha * l_sc[...] + jnp.sum(
            p, axis=-1, keepdims=True, dtype=jnp.float32
        )
        pv = jnp.dot(
            p.astype(mxu_dtype),
            v_ref[...].astype(mxu_dtype),
            preferred_element_type=jnp.float32,
        )
        acc_sc[...] = alpha * acc_sc[...] + pv
        m_sc[...] = m_new

        @pl.when(j == last_j)
        def _finalize():
            l = l_sc[...]
            if n_pad_keys:  # static; only on the no-mask ragged-key path
                # Zero-padded K columns score exactly 0, so each contributed
                # exp(-m_final) to the denominator (and exactly 0 to the
                # numerator, since padded V rows are 0).  Remove that
                # contribution exactly, in the same exp dtype as the loop.
                l = l - float(n_pad_keys) * jnp.exp(
                    (-m_sc[...]).astype(exp_dtype)
                ).astype(jnp.float32)
            inv_l = pl.reciprocal(l, approx=False)  # exact; runs once per q-block
            o_ref[...] = (acc_sc[...] * inv_l).astype(o_ref.dtype)

    return kernel


def _make_single_block_kernel(has_mask, n_pad_keys, mxu_dtype, exp_dtype):
    """Specialization for num_key_blocks == 1: plain softmax, no running state."""

    def kernel(*refs):
        if has_mask:
            q_ref, kt_ref, v_ref, m_ref, o_ref = refs
        else:
            q_ref, kt_ref, v_ref, o_ref = refs
            m_ref = None

        d = q_ref.shape[-1]
        scale = float(d) ** -0.5
        q = (q_ref[...].astype(jnp.float32) * scale).astype(mxu_dtype)
        s = jnp.dot(
            q, kt_ref[...].astype(mxu_dtype), preferred_element_type=jnp.float32
        )
        if has_mask:
            s = s + m_ref[...].astype(jnp.float32)

        # Finite clamp so rows fully masked with -inf don't produce inf - inf.
        m_row = jnp.maximum(jnp.max(s, axis=-1, keepdims=True), _NEG_BIG)
        p = jnp.exp((s - m_row).astype(exp_dtype))
        l_row = jnp.sum(p, axis=-1, keepdims=True, dtype=jnp.float32)
        if n_pad_keys:  # static; no-mask ragged-key path (see flash kernel)
            l_row = l_row - float(n_pad_keys) * jnp.exp(
                (-m_row).astype(exp_dtype)
            ).astype(jnp.float32)
        pv = jnp.dot(
            p.astype(mxu_dtype),
            v_ref[...].astype(mxu_dtype),
            preferred_element_type=jnp.float32,
        )
        o_ref[...] = (pv * pl.reciprocal(l_row, approx=False)).astype(o_ref.dtype)

    return kernel


@functools.partial(jax.jit, static_argnames=("tq", "tk", "mxu_dtype"))
def attention(Q, K, V, m=None, *, tq=512, tk=512, mxu_dtype=jnp.bfloat16):
    """softmax((Q @ K^T)/sqrt(d) + m) @ V, flash-style Pallas TPU kernel.

    m is optional; when None no mask is ever materialized or streamed.
    mxu_dtype controls the matmul / stream dtype (bf16 = fast path; on v5e
    bf16 is strongly recommended — its f32 MXU rate is a small fraction of
    bf16).  Softmax accumulation is always f32.
    """
    Nq, d = Q.shape
    Nk, dv = V.shape
    assert K.shape == (Nk, d)
    assert m is None or m.shape == (Nq, Nk)
    assert tq % 8 == 0 and tk % 128 == 0

    out_dtype = Q.dtype
    has_mask = m is not None
    use_bf16 = jnp.dtype(mxu_dtype) == jnp.dtype(jnp.bfloat16)
    exp_dtype = jnp.bfloat16 if use_bf16 else jnp.float32

    # bf16 fast path: stream Q/K/V and the (Nq, Nk) mask (the largest single
    # HBM stream) in bf16; K/V are re-read once per query block so halving
    # their bytes is a direct win on the DMA-bound path.
    if use_bf16:
        Q = Q.astype(jnp.bfloat16)
        K = K.astype(jnp.bfloat16)
        V = V.astype(jnp.bfloat16)
        if has_mask:
            m = m.astype(jnp.bfloat16)

    # Lane-dense, MXU-native (d, Nk) layout for K: a (tk, d) tile with small d
    # wastes most of each vreg's 128 lanes and feeds the MXU transposed.
    Kt = K.T

    # ---- tile selection ------------------------------------------------
    nq8 = _round_up(Nq, 8)
    tq_eff = min(tq, nq8)
    # Keep >= 2 query blocks whenever possible so the "parallel" query axis
    # can split across the two TensorCores on v7x (megacore).
    if nq8 >= 16 and tq_eff >= nq8:
        tq_eff = _round_up((nq8 + 1) // 2, 8)
    tk_eff = min(tk, _round_up(Nk, 128))

    Nq_pad = _round_up(Nq, tq_eff)
    Nk_pad = _round_up(Nk, tk_eff)
    num_qb = Nq_pad // tq_eff
    num_kb = Nk_pad // tk_eff

    # ---- padding ---------------------------------------------------------
    if Nq_pad != Nq:
        Q = jnp.pad(Q, ((0, Nq_pad - Nq), (0, 0)))
    if Nk_pad != Nk:
        Kt = jnp.pad(Kt, ((0, 0), (0, Nk_pad - Nk)))
        V = jnp.pad(V, ((0, Nk_pad - Nk), (0, 0)))
    if has_mask:
        if Nq_pad != Nq:
            m = jnp.pad(m, ((0, Nq_pad - Nq), (0, 0)))
        if Nk_pad != Nk:
            # Padded key columns get a large finite negative bias at pad time,
            # so the kernel never does per-step key masking on this path.
            m = jnp.pad(m, ((0, 0), (0, Nk_pad - Nk)), constant_values=_NEG_BIG)

    # No mask: zero-padded keys are corrected exactly at finalize time
    # (denominator fix) instead of per-step masking.
    n_pad_keys = 0 if has_mask else (Nk_pad - Nk)

    # ---- kernel / specs ----------------------------------------------------
    if num_kb == 1:
        kernel = _make_single_block_kernel(has_mask, n_pad_keys, mxu_dtype, exp_dtype)
        grid = (num_qb,)
        in_specs = [
            pl.BlockSpec((tq_eff, d), lambda i: (i, 0)),      # Q tile
            pl.BlockSpec((d, tk_eff), lambda i: (0, 0)),      # K^T (lane-dense)
            pl.BlockSpec((tk_eff, dv), lambda i: (0, 0)),     # V
        ]
        if has_mask:
            in_specs.append(pl.BlockSpec((tq_eff, tk_eff), lambda i: (i, 0)))
        out_spec = pl.BlockSpec((tq_eff, dv), lambda i: (i, 0))
        scratch_shapes = []
        dim_sem = ("parallel",)
    else:
        kernel = _make_flash_kernel(has_mask, n_pad_keys, mxu_dtype, exp_dtype)
        grid = (num_qb, num_kb)
        in_specs = [
            pl.BlockSpec((tq_eff, d), lambda i, j: (i, 0)),   # Q tile
            pl.BlockSpec((d, tk_eff), lambda i, j: (0, j)),   # K^T tile (lane-dense)
            pl.BlockSpec((tk_eff, dv), lambda i, j: (j, 0)),  # V tile
        ]
        if has_mask:
            in_specs.append(pl.BlockSpec((tq_eff, tk_eff), lambda i, j: (i, j)))
        out_spec = pl.BlockSpec((tq_eff, dv), lambda i, j: (i, 0))
        scratch_shapes = [
            pltpu.VMEM((tq_eff, d), mxu_dtype),      # staged scaled Q tile
            pltpu.VMEM((tq_eff, 1), jnp.float32),    # running max
            pltpu.VMEM((tq_eff, 1), jnp.float32),    # running denominator
            pltpu.VMEM((tq_eff, dv), jnp.float32),   # running numerator
        ]
        dim_sem = ("parallel", "arbitrary")

    operands = [Q, Kt, V] + ([m] if has_mask else [])

    out = pl.pallas_call(
        kernel,
        out_shape=jax.ShapeDtypeStruct((Nq_pad, dv), out_dtype),
        grid_spec=pltpu.PrefetchScalarGridSpec(
            num_scalar_prefetch=0,
            grid=grid,
            in_specs=in_specs,
            out_specs=out_spec,
            scratch_shapes=scratch_shapes,
        ),
        compiler_params=pltpu.CompilerParams(
            dimension_semantics=dim_sem,
            # Explicit ceiling: raises v5e's 16 MiB scoped default, stays well
            # under ~40 MiB of v7x's 64 MiB physical VMEM.
            vmem_limit_bytes=40 * 1024 * 1024,
        ),
    )(*operands)

    if Nq_pad != Nq:
        out = out[:Nq]
    return out


def _reference(Q, K, V, m):
    d = Q.shape[-1]
    s = (Q.astype(jnp.float32) @ K.astype(jnp.float32).T) / jnp.sqrt(jnp.float32(d))
    if m is not None:
        s = s + m.astype(jnp.float32)
    w = jax.nn.softmax(s, axis=-1)
    return w @ V.astype(jnp.float32)


if __name__ == "__main__":
    # Small shapes consistent with the module's unbatched convention.
    Nq, Nk, d, dv = 256, 384, 32, 128

    key = jax.random.PRNGKey(0)
    kq, kk, kv, km = jax.random.split(key, 4)
    Qf = jax.random.normal(kq, (Nq, d), dtype=jnp.float32)
    Kf = jax.random.normal(kk, (Nk, d), dtype=jnp.float32)
    Vf = jax.random.normal(kv, (Nk, dv), dtype=jnp.float32)
    mf = 0.1 * jax.random.normal(km, (Nq, Nk), dtype=jnp.float32)

    # 1) f32 path with additive mask/bias; single-key-block specialization
    #    (Nk fits one key tile) and 2 "parallel" query blocks.
    out = jax.block_until_ready(attention(Qf, Kf, Vf, mf, mxu_dtype=jnp.float32))
    ref = _reference(Qf, Kf, Vf, mf)
    assert out.shape == (Nq, dv)
    assert jnp.allclose(out, ref, atol=2e-2, rtol=2e-2), "f32+mask mismatch"

    # 2) bf16 fast path, no mask, multiple key blocks (flash path, bf16 exp).
    Qb, Kb, Vb = (x.astype(jnp.bfloat16) for x in (Qf, Kf, Vf))
    out_b = jax.block_until_ready(attention(Qb, Kb, Vb, tk=128))
    ref_b = _reference(Qb, Kb, Vb, None)
    assert out_b.shape == (Nq, dv)
    assert jnp.allclose(out_b.astype(jnp.float32), ref_b, atol=5e-2, rtol=5e-2), (
        "bf16 no-mask flash mismatch"
    )

    # 3) Ragged sizes with mask, flash path (mask key-padding handled at pad
    #    time with a large negative bias; no in-kernel key masking).
    Nq2, Nk2 = 200, 300
    out_r = jax.block_until_ready(
        attention(Qf[:Nq2], Kf[:Nk2], Vf[:Nk2], mf[:Nq2, :Nk2],
                  tk=128, mxu_dtype=jnp.float32)
    )
    ref_r = _reference(Qf[:Nq2], Kf[:Nk2], Vf[:Nk2], mf[:Nq2, :Nk2])
    assert out_r.shape == (Nq2, dv)
    assert jnp.allclose(out_r, ref_r, atol=2e-2, rtol=2e-2), "ragged+mask mismatch"

    # 4) Ragged sizes, no mask, bf16 flash path (exercises the exact
    #    padded-key denominator correction at finalize time).
    out_rb = jax.block_until_ready(attention(Qb[:Nq2], Kb[:Nk2], Vb[:Nk2], tk=128))
    ref_rb = _reference(Qb[:Nq2], Kb[:Nk2], Vb[:Nk2], None)
    assert out_rb.shape == (Nq2, dv)
    assert jnp.allclose(out_rb.astype(jnp.float32), ref_rb, atol=5e-2, rtol=5e-2), (
        "ragged no-mask mismatch"
    )

    print("KERNEL_OK")
</pallas_src>

<mosaic_0001>
module attributes {stable_mosaic.version = 11 : i64} {
  func.func @kernel(%arg0: i32, %arg1: memref<128x32xf32, #tpu.memory_space<vmem>>, %arg2: memref<32x384xf32, #tpu.memory_space<vmem>>, %arg3: memref<384x128xf32, #tpu.memory_space<vmem>>, %arg4: memref<128x384xf32, #tpu.memory_space<vmem>>, %arg5: memref<128x128xf32, #tpu.memory_space<vmem>>) attributes {dimension_semantics = [#tpu.dimension_semantics<parallel>], iteration_bounds = array<i64: 2>, scalar_prefetch = 0 : i64, scratch_operands = 0 : i64, tpu.core_type = #tpu.core_type<tc>, window_params = [{transform_indices = @transform_0, window_bounds = array<i64: 128, 32>}, {pipeline_mode = #tpu.pipeline_mode<synchronous>, transform_indices = @transform_1, window_bounds = array<i64: 32, 384>}, {pipeline_mode = #tpu.pipeline_mode<synchronous>, transform_indices = @transform_2, window_bounds = array<i64: 384, 128>}, {transform_indices = @transform_3, window_bounds = array<i64: 128, 384>}, {transform_indices = @transform_4, window_bounds = array<i64: 128, 128>}]} {
    %c0 = arith.constant 0 : index
    %c0_0 = arith.constant 0 : index
    %0 = vector.load %arg1[%c0, %c0_0] : memref<128x32xf32, #tpu.memory_space<vmem>>, vector<128x32xf32>
    %cst = arith.constant 0.176776692 : f32
    %1 = vector.broadcast %cst : f32 to vector<128x32xf32>
    %2 = arith.mulf %0, %1 : vector<128x32xf32>
    %c0_1 = arith.constant 0 : index
    %c0_2 = arith.constant 0 : index
    %3 = vector.load %arg2[%c0_1, %c0_2] : memref<32x384xf32, #tpu.memory_space<vmem>>, vector<32x384xf32>
    %cst_3 = arith.constant dense<0.000000e+00> : vector<128x384xf32>
    %4 = tpu.matmul %2, %3, %cst_3 {dimension_numbers = #tpu.dot_dimension_numbers<[1], [0], [0], [1], [0, 0, 1, 1], [], []>} : vector<128x32xf32>, vector<32x384xf32>, vector<128x384xf32> -> vector<128x384xf32>
    %c0_4 = arith.constant 0 : index
    %c0_5 = arith.constant 0 : index
    %5 = vector.load %arg4[%c0_4, %c0_5] : memref<128x384xf32, #tpu.memory_space<vmem>>, vector<128x384xf32>
    %6 = arith.addf %4, %5 : vector<128x384xf32>
    %cst_6 = arith.constant dense<0xFF800000> : vector<128xf32>
    %7 = vector.multi_reduction <maximumf>, %6, %cst_6 [1] : vector<128x384xf32> to vector<128xf32>
    %8 = vector.shape_cast %7 : vector<128xf32> to vector<128x1xf32>
    %cst_7 = arith.constant -1.000000e+30 : f32
    %9 = vector.broadcast %cst_7 : f32 to vector<128x1xf32>
    %10 = arith.maximumf %8, %9 : vector<128x1xf32>
    %11 = vector.broadcast %10 : vector<128x1xf32> to vector<128x384xf32>
    %12 = arith.subf %6, %11 : vector<128x384xf32>
    %13 = math.exp %12 : vector<128x384xf32>
    %cst_8 = arith.constant dense<0.000000e+00> : vector<128xf32>
    %14 = vector.multi_reduction <add>, %13, %cst_8 [1] : vector<128x384xf32> to vector<128xf32>
    %15 = vector.shape_cast %14 : vector<128xf32> to vector<128x1xf32>
    %c0_9 = arith.constant 0 : index
    %c0_10 = arith.constant 0 : index
    %16 = vector.load %arg3[%c0_9, %c0_10] : memref<384x128xf32, #tpu.memory_space<vmem>>, vector<384x128xf32>
    %cst_11 = arith.constant dense<0.000000e+00> : vector<128x128xf32>
    %17 = tpu.matmul %13, %16, %cst_11 {dimension_numbers = #tpu.dot_dimension_numbers<[1], [0], [0], [1], [0, 0, 1, 1], [], []>} : vector<128x384xf32>, vector<384x128xf32>, vector<128x128xf32> -> vector<128x128xf32>
    %18 = tpu.reciprocal %15 : vector<128x1xf32> -> vector<128x1xf32>
    %19 = vector.broadcast %18 : vector<128x1xf32> to vector<128x128xf32>
    %20 = arith.mulf %17, %19 : vector<128x128xf32>
    %c0_12 = arith.constant 0 : index
    %c0_13 = arith.constant 0 : index
    %21 = vector.load %arg5[%c0_12, %c0_13] : memref<128x128xf32, #tpu.memory_space<vmem>>, vector<128x128xf32>
    tpu.vector_store %arg5[%c0_12, %c0_13], %20 {strides = array<i32>} : memref<128x128xf32, #tpu.memory_space<vmem>>, vector<128x128xf32>,
    return
  }
  func.func @transform_0(%arg0: i32) -> (i32, i32) {
    %c0_i32 = arith.constant 0 : i32
    %c0_i32_0 = arith.constant 0 : i32
    return %arg0, %c0_i32 : i32, i32
  }
  func.func @transform_1(%arg0: i32) -> (i32, i32) {
    %c0_i32 = arith.constant 0 : i32
    %c0_i32_0 = arith.constant 0 : i32
    %c0_i32_1 = arith.constant 0 : i32
    return %c0_i32, %c0_i32_0 : i32, i32
  }
  func.func @transform_2(%arg0: i32) -> (i32, i32) {
    %c0_i32 = arith.constant 0 : i32
    %c0_i32_0 = arith.constant 0 : i32
    %c0_i32_1 = arith.constant 0 : i32
    return %c0_i32, %c0_i32_0 : i32, i32
  }
  func.func @transform_3(%arg0: i32) -> (i32, i32) {
    %c0_i32 = arith.constant 0 : i32
    %c0_i32_0 = arith.constant 0 : i32
    return %arg0, %c0_i32 : i32, i32
  }
  func.func @transform_4(%arg0: i32) -> (i32, i32) {
    %c0_i32 = arith.constant 0 : i32
    %c0_i32_0 = arith.constant 0 : i32
    return %arg0, %c0_i32 : i32, i32
  }
}

</mosaic_0001>

<llo_original>
// kernel: attention.1
$region0: #{attention.1}
  #allocation0 [shape = 'u32[]', space=smem, size = 0x4, offset = 0x4, fixed_abs, tag = 'smem constant byte address 0x4 - core index']
  #allocation1 [shape = 'u32[144,128]{1,0:T(1,128)}', space=vmem, size = 0x12000, scoped, tag = 'internal scratch']
  %s0 = inlined_call_operand.vmem [shape: f32[256,32], index: 0, kind: input, shape index: {}]
  %s1 = inlined_call_operand.vmem [shape: f32[32,384], index: 1, kind: input, shape index: {}]
  %s2 = inlined_call_operand.hbm [shape: f32[384,128], index: 2, kind: input, shape index: {}]
  %s3 = inlined_call_operand.hbm [shape: f32[256,384], index: 3, kind: input, shape index: {}]
  %s4 = inlined_call_operand.hbm [shape: f32[256,128], index: 4, kind: output, shape index: {}]
  %s5 = sld [smem:[#allocation0]]
  $region57: #{attention.1} parent=0
    _
  %s7 = ssub.s32 1, %s5
  %s8 = scalar_select 0, %s7, %s5
  $region1: #{attention.1} parent=0
    #allocation2 [shape = 'u8[196608]{0}', space=vmem, size = 0x30000, scoped, tag = 'input window, operand 2, single buffered']
    #allocation3 [shape = 's32[2]{0}', space=sflag, size = 0x8, scoped, tag = 'scoped memory for attention.1']
    #allocation4 [shape = 's32[2]{0}', space=sflag, size = 0x8, scoped, tag = 'scoped memory for attention.1']
    #allocation5 [shape = 'u8[393216]{0}', space=vmem, size = 0x60000, scoped, tag = 'input window, operand 3']
    #allocation6 [shape = 's32[2]{0}', space=sflag, size = 0x8, scoped, tag = 'scoped memory for attention.1']
    #allocation7 [shape = 'u8[131072]{0}', space=vmem, size = 0x20000, scoped, tag = 'output window, operand 0']
    %9 = vsyncpa [#allocation3], 0
    %10 = vsyncpa [#allocation6], 0
    %s11 = scalar_lea.sflag [#allocation6], 1
    %12 = vsyncpa %s11, 0
    %13 = vsyncpa [#allocation4], 0
    %s14 = scalar_lea.sflag [#allocation4], 1
    %15 = vsyncpa %s14, 0
    loop: start=0, step=1, limit=4
    $region2: #{attention.1} parent=1 // loop_pre_header
      _
    $region3: #{attention.1} parent=1 // loop_header
      %s17 = sphi 0, %s21
      %p18 = scmp.ge.s32.totalorder %s17, 4
      %s27 = sphi 0, %s29
      %s30 = sphi 0, %s27
      %s31 = sphi 0, %s30
      %s47 = sphi 0, %s31
      %s51 = sphi 0, %s51
      %s53 = sphi 0, %s51
      %s54 = sphi 0, %s53
      %s68 = sphi 0, %s54
      %s72 = sphi 0, %s72
      %s74 = sphi 0, %s72
      %s75 = sphi 0, %s74
      %s89 = sphi 0, %s75
      %s95 = sphi 0, %s97
      %s98 = sphi 0, %s95
      %s99 = sphi 0, %s98
      %s115 = sphi 0, %s99
      %s121 = sphi 0, %s123
      %s124 = sphi 0, %s121
      %s125 = sphi 0, %s124
      %s141 = sphi 0, %s125
    $region4: #{attention.1} parent=1 // loop_header_branch
      %20 = sbr.rel (%p18) target = $region8
    $region5: #{attention.1} parent=1 // loop_body
      %s22 = ssub.s32 %s17, 1
      %s23 = ssub.s32 %s17, 2
      %s24 = sadd.s32 %s17, 1
      %s25 = ssub.s32 %s17, %s24
      %p26 = scmp.eq.s32.totalorder %s25, 0
      %s28 = sadd.s32 %s27, 1
      %s29 = scalar_select %p26, %s27, %s28
      %p32 = pneg %p26
      %p33 = scmp.eq.s32.totalorder %s17, 1
      %p34 = por %p32, %p33
      %p35 = scmp.ne.s32.totalorder %s27, %s30
      %p36 = scmp.eq.s32.totalorder %s17, 0
      %p37 = por %p35, %p36
      %p38 = scmp.ne.s32.totalorder %s27, %s30
      %p39 = scmp.eq.s32.totalorder %s22, 1
      %p40 = por %p38, %p39
      %p41 = scmp.ne.s32.totalorder %s30, %s31
      %p42 = scmp.eq.s32.totalorder %s22, 0
      %p43 = por %p41, %p42
      %p44 = scmp.ne.s32.totalorder %s30, %s31
      %p45 = scmp.eq.s32.totalorder %s23, 1
      %p46 = por %p44, %p45
      %p48 = scmp.ne.s32.totalorder %s31, %s47
      %p49 = scmp.eq.s32.totalorder %s23, 0
      %p50 = por %p48, %p49
      %s52 = sadd.s32 %s51, 1
      %p55 = scmp.eq.s32.totalorder %s17, 1
      %p56 = scmp.ne.s32.totalorder %s51, %s53
      %p57 = scmp.eq.s32.totalorder %s17, 0
      %p58 = por %p56, %p57
      %p59 = scmp.ne.s32.totalorder %s51, %s53
      %p60 = scmp.eq.s32.totalorder %s22, 1
      %p61 = por %p59, %p60
      %p62 = scmp.ne.s32.totalorder %s53, %s54
      %p63 = scmp.eq.s32.totalorder %s22, 0
      %p64 = por %p62, %p63
      %p65 = scmp.ne.s32.totalorder %s53, %s54
      %p66 = scmp.eq.s32.totalorder %s23, 1
      %p67 = por %p65, %p66
      %p69 = scmp.ne.s32.totalorder %s54, %s68
      %p70 = scmp.eq.s32.totalorder %s23, 0
      %p71 = por %p69, %p70
      %s73 = sadd.s32 %s72, 1
      %p76 = scmp.eq.s32.totalorder %s17, 1
      %p77 = scmp.ne.s32.totalorder %s72, %s74
      %p78 = scmp.eq.s32.totalorder %s17, 0
      %p79 = por %p77, %p78
      %p80 = scmp.ne.s32.totalorder %s72, %s74
      %p81 = scmp.eq.s32.totalorder %s22, 1
      %p82 = por %p80, %p81
      %p83 = scmp.ne.s32.totalorder %s74, %s75
      %p84 = scmp.eq.s32.totalorder %s22, 0
      %p85 = por %p83, %p84
      %p86 = scmp.ne.s32.totalorder %s74, %s75
      %p87 = scmp.eq.s32.totalorder %s23, 1
      %p88 = por %p86, %p87
      %p90 = scmp.ne.s32.totalorder %s75, %s89
      %p91 = scmp.eq.s32.totalorder %s23, 0
      %p92 = por %p90, %p91
      %s93 = ssub.s32 %s17, %s24
      %p94 = scmp.eq.s32.totalorder %s93, 0
      %s96 = sadd.s32 %s95, 1
      %s97 = scalar_select %p94, %s95, %s96
      %p100 = pneg %p94
      %p101 = scmp.eq.s32.totalorder %s17, 1
      %p102 = por %p100, %p101
      %p103 = scmp.ne.s32.totalorder %s95, %s98
      %p104 = scmp.eq.s32.totalorder %s17, 0
      %p105 = por %p103, %p104
      %p106 = scmp.ne.s32.totalorder %s95, %s98
      %p107 = scmp.eq.s32.totalorder %s22, 1
      %p108 = por %p106, %p107
      %p109 = scmp.ne.s32.totalorder %s98, %s99
      %p110 = scmp.eq.s32.totalorder %s22, 0
      %p111 = por %p109, %p110
      %p112 = scmp.ne.s32.totalorder %s98, %s99
      %p113 = scmp.eq.s32.totalorder %s23, 1
      %p114 = por %p112, %p113
      %p116 = scmp.ne.s32.totalorder %s99, %s115
      %p117 = scmp.eq.s32.totalorder %s23, 0
      %p118 = por %p116, %p117
      %s119 = ssub.s32 %s17, %s24
      %p120 = scmp.eq.s32.totalorder %s119, 0
      %s122 = sadd.s32 %s121, 1
      %s123 = scalar_select %p120, %s121, %s122
      %p126 = pneg %p120
      %p127 = scmp.eq.s32.totalorder %s17, 1
      %p128 = por %p126, %p127
      %p129 = scmp.ne.s32.totalorder %s121, %s124
      %p130 = scmp.eq.s32.totalorder %s17, 0
      %p131 = por %p129, %p130
      %p132 = scmp.ne.s32.totalorder %s121, %s124
      %p133 = scmp.eq.s32.totalorder %s22, 1
      %p134 = por %p132, %p133
      %p135 = scmp.ne.s32.totalorder %s124, %s125
      %p136 = scmp.eq.s32.totalorder %s22, 0
      %p137 = por %p135, %p136
      %p138 = scmp.ne.s32.totalorder %s124, %s125
      %p139 = scmp.eq.s32.totalorder %s23, 1
      %p140 = por %p138, %p139
      %p142 = scmp.ne.s32.totalorder %s125, %s141
      %p143 = scmp.eq.s32.totalorder %s23, 0
      %p144 = por %p142, %p143
      %p145 = scmp.le.s32.totalorder 1, %s17
      %p146 = scmp.lt.s32.totalorder %s17, 3
      %p147 = pnand %p145, %p146
      %p148 = pneg %p147
      // Predicated region
      $region9: #{attention.1} parent=5 // pred_check
        _
      $region10: #{attention.1} parent=5 // pred_check_branch
        %150 = sbr.rel (%p147) target = $region12
      $region11: #{attention.1} parent=5 // pred_region
        %s151 = ssub.s32 %s17, 1
        // Predicated region
        $region13: #{attention.1} parent=11 // pred_check
          %p152 = pneg %p64
        $region14: #{attention.1} parent=11 // pred_check_branch
          %154 = sbr.rel (%p152) target = $region16
        $region15: #{attention.1} parent=11 // pred_region
          _
        $region16: #{attention.1} parent=11 // pred_fallthru
          _
        // Predicated region
        $region17: #{attention.1} parent=11 // pred_check
          %p155 = pneg %p85
        $region18: #{attention.1} parent=11 // pred_check_branch
          %157 = sbr.rel (%p155) target = $region20
        $region19: #{attention.1} parent=11 // pred_region
          %s159 = ssub.s32 6144, 6144
          %160 = vsyncadd [#allocation3], %s159
          %s161 = sshll.u32 [#allocation2], 4
          %s162 = int_to_ptr.vmem [resolvable:$true] %s161
          %167 = dma.hbm_to_vmem [thread:$0]  %s2, 6144, %s162, [#allocation3], 128, 128, 8
        $region20: #{attention.1} parent=11 // pred_fallthru
          _
      $region12: #{attention.1} parent=5 // pred_fallthru
        _
      %p168 = scmp.lt.s32.totalorder %s17, 2
      // Predicated region
      $region21: #{attention.1} parent=5 // pred_check
        %p169 = pneg %p168
      $region22: #{attention.1} parent=5 // pred_check_branch
        %171 = sbr.rel (%p169) target = $region24
      $region23: #{attention.1} parent=5 // pred_region
        // Predicated region
        $region25: #{attention.1} parent=23 // pred_check
          %p172 = pneg %p37
        $region26: #{attention.1} parent=23 // pred_check_branch
          %174 = sbr.rel (%p172) target = $region28
        $region27: #{attention.1} parent=23 // pred_region
          %s175 = smul.u32 16, %s17
          %p176 = scmp.lt.s32.totalorder %s175, 31
          %s177 = scalar_select %p176, %s175, 31
          %s178 = smul.addr %s177, 8
          %s179 = scalar_lea.vmem %s0, %s178
          %s180 = smul.u32 16, %s17
        $region28: #{attention.1} parent=23 // pred_fallthru
          _
        // Predicated region
        $region29: #{attention.1} parent=23 // pred_check
          %p181 = pneg %p105
        $region30: #{attention.1} parent=23 // pred_check_branch
          %183 = sbr.rel (%p181) target = $region32
        $region31: #{attention.1} parent=23 // pred_region
          %s184 = sand.u32 %s95, 1
          %s185 = scalar_lea.sflag [#allocation6], %s184
          %s186 = sand.u32 %s95, 1
          %s187 = smul.addr %s186, 384
          %s188 = scalar_lea.vmem [#allocation5], %s187
          %s189 = smul.u32 16, %s17
          %s191 = ssub.s32 6144, 6144
          %192 = vsyncadd %s185, %s191
          %s193 = smul.addr %s189, 3
          %s194 = smul.addr %s193, 128
          %s195 = scalar_lea.hbm %s3, %s194
          %s196 = sshll.u32 %s188, 4
          %s197 = int_to_ptr.vmem [resolvable:$true] %s196
          %202 = dma.hbm_to_vmem [thread:$0]  %s195, 6144, %s197, %s185, 384, 384, 24
        $region32: #{attention.1} parent=23 // pred_fallthru
          _
      $region24: #{attention.1} parent=5 // pred_fallthru
        _
      %p203 = scmp.le.s32.totalorder 1, %s17
      %p204 = scmp.lt.s32.totalorder %s17, 3
      %p205 = pnand %p203, %p204
      %p206 = pneg %p205
      // Predicated region
      $region33: #{attention.1} parent=5 // pred_check
        _
      $region34: #{attention.1} parent=5 // pred_check_branch
        %208 = sbr.rel (%p205) target = $region36
      $region35: #{attention.1} parent=5 // pred_region
        %s209 = ssub.s32 %s17, 1
        // Predicated region
        $region37: #{attention.1} parent=35 // pred_check
          %p210 = pneg %p85
        $region38: #{attention.1} parent=35 // pred_check_branch
          %212 = sbr.rel (%p210) target = $region40
        $region39: #{attention.1} parent=35 // pred_region
          %213 = dma.done [#allocation3], 6144
        $region40: #{attention.1} parent=35 // pred_fallthru
          _
        %s214 = sand.u32 %s98, 1
        %s215 = scalar_lea.sflag [#allocation6], %s214
        %s216 = sand.u32 %s98, 1
        %s217 = smul.addr %s216, 384
        %s218 = scalar_lea.vmem [#allocation5], %s217
        // Predicated region
        $region41: #{attention.1} parent=35 // pred_check
          %p219 = pneg %p111
        $region42: #{attention.1} parent=35 // pred_check_branch
          %221 = sbr.rel (%p219) target = $region44
        $region43: #{attention.1} parent=35 // pred_region
          %222 = dma.done %s215, 6144
        $region44: #{attention.1} parent=35 // pred_fallthru
          _
        %s223 = smul.u32 16, %s22
        %p224 = scmp.lt.s32.totalorder %s223, 31
        %s225 = scalar_select %p224, %s223, 31
        %s226 = smul.addr %s225, 8
        %s227 = scalar_lea.vmem %s0, %s226
        %p228 = pneg %p43
        %p229 = pneg %p40
        %p230 = pneg %p64
        %p231 = pneg %p61
        %p232 = pneg %p85
        %p233 = pneg %p82
        %s234 = sand.u32 %s98, 1
        %s235 = scalar_lea.sflag [#allocation6], %s234
        %s236 = sand.u32 %s98, 1
        %s237 = smul.addr %s236, 384
        %s238 = scalar_lea.vmem [#allocation5], %s237
        %p239 = pneg %p111
        %p240 = pneg %p108
        %p241 = pneg %p137
        %p242 = pneg %p134
        %s243 = sand.u32 %s124, 1
        %s244 = scalar_lea.sflag [#allocation4], %s243
        %s245 = sand.u32 %s124, 1
        %s246 = smul.addr %s245, 128
        %s247 = scalar_lea.vmem [#allocation7], %s246
        %s248 = smul.u32 16, %s22
        %p249 = scmp.lt.s32.totalorder %s248, 31
        %s250 = scalar_select %p249, %s248, 31
        %s251 = smul.addr %s250, 8
        %s252 = scalar_lea.vmem %s0, %s251
        %s253 = smul.u32 16, %s22
        %s254 = smul.u32 16, %s22
        %s255 = smul.u32 16, %s22
        %v256 = vld [vmem:[%s252] sm:$0xff]
        %v257 = vld [vmem:[%s252 + $0x8] sm:$0xff]
        %v258 = vld [vmem:[%s252 + $0x10] sm:$0xff]
        %v259 = vld [vmem:[%s252 + $0x18] sm:$0xff]
        %v260 = vld [vmem:[%s252 + $0x20] sm:$0xff]
        %v261 = vld [vmem:[%s252 + $0x28] sm:$0xff]
        %v262 = vld [vmem:[%s252 + $0x30] sm:$0xff]
        %v263 = vld [vmem:[%s252 + $0x38] sm:$0xff]
        %v264 = vld [vmem:[%s252 + $0x40] sm:$0xff]
        %v265 = vld [vmem:[%s252 + $0x48] sm:$0xff]
        %v266 = vld [vmem:[%s252 + $0x50] sm:$0xff]
        %v267 = vld [vmem:[%s252 + $0x58] sm:$0xff]
        %v268 = vld [vmem:[%s252 + $0x60] sm:$0xff]
        %v269 = vld [vmem:[%s252 + $0x68] sm:$0xff]
        %v270 = vld [vmem:[%s252 + $0x70] sm:$0xff]
        %v271 = vld [vmem:[%s252 + $0x78] sm:$0xff]
        %v272 = vmul.f32 %v256, 0.17677669
        %v273 = vmul.f32 %v257, 0.17677669
        %v274 = vmul.f32 %v258, 0.17677669
        %v275 = vmul.f32 %v259, 0.17677669
        %v276 = vmul.f32 %v260, 0.17677669
        %v277 = vmul.f32 %v261, 0.17677669
        %v278 = vmul.f32 %v262, 0.17677669
        %v279 = vmul.f32 %v263, 0.17677669
        %v280 = vmul.f32 %v264, 0.17677669
        %v281 = vmul.f32 %v265, 0.17677669
        %v282 = vmul.f32 %v266, 0.17677669
        %v283 = vmul.f32 %v267, 0.17677669
        %v284 = vmul.f32 %v268, 0.17677669
        %v285 = vmul.f32 %v269, 0.17677669
        %v286 = vmul.f32 %v270, 0.17677669
        %v287 = vmul.f32 %v271, 0.17677669
        %v288 = vld [vmem:[%s1] sm:$0xff]
        %v289 = vld [vmem:[%s1 + $0x8] sm:$0xff]
        %v290 = vld [vmem:[%s1 + $0x10] sm:$0xff]
        %v291 = vld [vmem:[%s1 + $0x18] sm:$0xff]
        %v292 = vld [vmem:[%s1 + $0x20] sm:$0xff]
        %v293 = vld [vmem:[%s1 + $0x28] sm:$0xff]
        %v294 = vld [vmem:[%s1 + $0x30] sm:$0xff]
        %v295 = vld [vmem:[%s1 + $0x38] sm:$0xff]
        %v296 = vld [vmem:[%s1 + $0x40] sm:$0xff]
        %v297 = vld [vmem:[%s1 + $0x48] sm:$0xff]
        %v298 = vld [vmem:[%s1 + $0x50] sm:$0xff]
        %v299 = vld [vmem:[%s1 + $0x58] sm:$0xff]
        %v300 = vld [vmem:[%s218] sm:$0xff]
        %v301 = vld [vmem:[%s218 + $0x8] sm:$0xff]
        %v302 = vld [vmem:[%s218 + $0x10] sm:$0xff]
        %v303 = vld [vmem:[%s218 + $0x18] sm:$0xff]
        %v304 = vld [vmem:[%s218 + $0x20] sm:$0xff]
        %v305 = vld [vmem:[%s218 + $0x28] sm:$0xff]
        %v306 = vld [vmem:[%s218 + $0x30] sm:$0xff]
        %v307 = vld [vmem:[%s218 + $0x38] sm:$0xff]
        %v308 = vld [vmem:[%s218 + $0x40] sm:$0xff]
        %v309 = vld [vmem:[%s218 + $0x48] sm:$0xff]
        %v310 = vld [vmem:[%s218 + $0x50] sm:$0xff]
        %v311 = vld [vmem:[%s218 + $0x58] sm:$0xff]
        %v312 = vld [vmem:[%s218 + $0x60] sm:$0xff]
        %v313 = vld [vmem:[%s218 + $0x68] sm:$0xff]
        %v314 = vld [vmem:[%s218 + $0x70] sm:$0xff]
        %v315 = vld [vmem:[%s218 + $0x78] sm:$0xff]
        %v316 = vld [vmem:[%s218 + $0x80] sm:$0xff]
        %v317 = vld [vmem:[%s218 + $0x88] sm:$0xff]
        %v318 = vld [vmem:[%s218 + $0x90] sm:$0xff]
        %v319 = vld [vmem:[%s218 + $0x98] sm:$0xff]
        %v320 = vld [vmem:[%s218 + $0xa0] sm:$0xff]
        %v321 = vld [vmem:[%s218 + $0xa8] sm:$0xff]
        %v322 = vld [vmem:[%s218 + $0xb0] sm:$0xff]
        %v323 = vld [vmem:[%s218 + $0xb8] sm:$0xff]
        %v324 = vld [vmem:[%s218 + $0xc0] sm:$0xff]
        %v325 = vld [vmem:[%s218 + $0xc8] sm:$0xff]
        %v326 = vld [vmem:[%s218 + $0xd0] sm:$0xff]
        %v327 = vld [vmem:[%s218 + $0xd8] sm:$0xff]
        %v328 = vld [vmem:[%s218 + $0xe0] sm:$0xff]
        %v329 = vld [vmem:[%s218 + $0xe8] sm:$0xff]
        %v330 = vld [vmem:[%s218 + $0xf0] sm:$0xff]
        %v331 = vld [vmem:[%s218 + $0xf8] sm:$0xff]
        %v332 = vld [vmem:[%s218 + $0x100] sm:$0xff]
        %v333 = vld [vmem:[%s218 + $0x108] sm:$0xff]
        %v334 = vld [vmem:[%s218 + $0x110] sm:$0xff]
        %v335 = vld [vmem:[%s218 + $0x118] sm:$0xff]
        %v336 = vld [vmem:[%s218 + $0x120] sm:$0xff]
        %v337 = vld [vmem:[%s218 + $0x128] sm:$0xff]
        %v338 = vld [vmem:[%s218 + $0x130] sm:$0xff]
        %v339 = vld [vmem:[%s218 + $0x138] sm:$0xff]
        %v340 = vld [vmem:[%s218 + $0x140] sm:$0xff]
        %v341 = vld [vmem:[%s218 + $0x148] sm:$0xff]
        %v342 = vld [vmem:[%s218 + $0x150] sm:$0xff]
        %v343 = vld [vmem:[%s218 + $0x158] sm:$0xff]
        %v344 = vld [vmem:[%s218 + $0x160] sm:$0xff]
        %v345 = vld [vmem:[%s218 + $0x168] sm:$0xff]
        %v346 = vld [vmem:[%s218 + $0x170] sm:$0xff]
        %v347 = vld [vmem:[%s218 + $0x178] sm:$0xff]
        %vm348 = vcmask 261120
        %v350 = vsel %vm348, %v272, 0
        %v353 = vsel %vm348, %v273, 0
        %v356 = vsel %vm348, %v274, 0
        %v359 = vsel %vm348, %v275, 0
        %v362 = vsel %vm348, %v276, 0
        %v365 = vsel %vm348, %v277, 0
        %v368 = vsel %vm348, %v278, 0
        %v371 = vsel %vm348, %v279, 0
        %v374 = vsel %vm348, %v280, 0
        %v377 = vsel %vm348, %v281, 0
        %v380 = vsel %vm348, %v282, 0
        %v383 = vsel %vm348, %v283, 0
        %v386 = vsel %vm348, %v284, 0
        %v389 = vsel %vm348, %v285, 0
        %v392 = vsel %vm348, %v286, 0
        %v395 = vsel %vm348, %v287, 0
        %397 = vmatprep.subr.mxu0 %v289
        %398 = vmatpush1.msra.mxu0 %v288
        %399 = vmatprep.subr.mxu0 %v292
        %400 = vmatpush1.msra.mxu0 %v291
        %401 = vmatprep.subr.mxu0 %v295
        %402 = vmatpush1.msra.mxu0 %v294
        %403 = vmatprep.subr.mxu0 %v298
        %404 = vmatpush1.msra.mxu0 %v297
        %405 = vmatprep.subr.mxu0 0.0
        %406 = vmatpush1.msra.mxu0 0.0
        %407 = vmatprep.subr.mxu0 0.0
        %408 = vmatpush1.msra.mxu0 0.0
        %409 = vmatprep.subr.mxu0 0.0
        %410 = vmatpush1.msra.mxu0 0.0
        %411 = vmatprep.subr.mxu0 0.0
        %412 = vmatpush1.msra.mxu0 0.0
        %413 = vmatprep.subr.mxu0 0.0
        %414 = vmatpush1.msra.mxu0 0.0
        %415 = vmatprep.subr.mxu0 0.0
        %416 = vmatpush1.msra.mxu0 0.0
        %417 = vmatprep.subr.mxu0 0.0
        %418 = vmatpush1.msra.mxu0 0.0
        %419 = vmatprep.subr.mxu0 0.0
        %420 = vmatpush1.msra.mxu0 0.0
        %421 = vmatprep.subr.mxu0 0.0
        %422 = vmatpush1.msra.mxu0 0.0
        %423 = vmatprep.subr.mxu0 0.0
        %424 = vmatpush1.msra.mxu0 0.0
        %425 = vmatprep.subr.mxu0 0.0
        %426 = vmatpush1.msra.mxu0 0.0
        %427 = vmatprep.subr.mxu0 0.0
        %428 = vmatpush1.msra.mxu0 0.0
        %429 = vmatprep.subr.mxu0 0.0
        %430 = vmatpush1.msra.mxu0 0.0
        %431 = vmatprep.subr.mxu0 0.0
        %432 = vmatpush1.msra.mxu0 0.0
        %433 = vmatprep.subr.mxu0 0.0
        %434 = vmatpush1.msra.mxu0 0.0
        %435 = vmatprep.subr.mxu0 0.0
        %436 = vmatpush1.msra.mxu0 0.0
        %437 = vmatprep.subr.mxu0 0.0
        %438 = vmatpush1.msra.mxu0 0.0
        %439 = vmatprep.subr.mxu0 0.0
        %440 = vmatpush1.msra.mxu0 0.0
        %441 = vmatprep.subr.mxu0 0.0
        %442 = vmatpush1.msra.mxu0 0.0
        %443 = vmatprep.subr.mxu0 0.0
        %444 = vmatpush1.msra.mxu0 0.0
        %445 = vmatprep.subr.mxu0 0.0
        %446 = vmatpush1.msra.mxu0 0.0
        %447 = vmatprep.subr.mxu0 0.0
        %448 = vmatpush1.msra.mxu0 0.0
        %449 = vmatprep.subr.mxu0 0.0
        %450 = vmatpush1.msra.mxu0 0.0
        %451 = vmatprep.subr.mxu0 0.0
        %452 = vmatpush1.msra.mxu0 0.0
        %453 = vmatprep.subr.mxu0 0.0
        %454 = vmatpush1.msra.mxu0 0.0
        %455 = vmatprep.subr.mxu0 0.0
        %456 = vmatpush1.msra.mxu0 0.0
        %457 = vmatprep.subr.mxu0 0.0
        %458 = vmatpush1.msra.mxu0 0.0
        %459 = vmatprep.subr.mxu0 0.0
        %460 = vmatpush1.msra.mxu0 0.0
        %461 = vmatprep.mubr.f32.mxu0 0.0
        %462 = vmatmul.mubr.f32.gmra.mrb[0].mxu0 %v350
        %v463 = vpop.f32.mrb[0].mxu0
        %v464 = vadd.f32 %v300, %v463
        %v465 = vpop.f32.mrb[0].mxu0
        %v466 = vadd.f32 %v301, %v465
        %467 = vmatprep.mubr.f32.mxu0 0.0
        %468 = vmatmul.mubr.f32.gmra.mrb[0].mxu0 %v353
        %v469 = vpop.f32.mrb[0].mxu0
        %v470 = vadd.f32 %v303, %v469
        %v471 = vpop.f32.mrb[0].mxu0
        %v472 = vadd.f32 %v304, %v471
        %473 = vmatprep.mubr.f32.mxu0 0.0
        %474 = vmatmul.mubr.f32.gmra.mrb[0].mxu0 %v356
        %v475 = vpop.f32.mrb[0].mxu0
        %v476 = vadd.f32 %v306, %v475
        %v477 = vpop.f32.mrb[0].mxu0
        %v478 = vadd.f32 %v307, %v477
        %479 = vmatprep.mubr.f32.mxu0 0.0
        %480 = vmatmul.mubr.f32.gmra.mrb[0].mxu0 %v359
        %v481 = vpop.f32.mrb[0].mxu0
        %v482 = vadd.f32 %v309, %v481
        %v483 = vpop.f32.mrb[0].mxu0
        %v484 = vadd.f32 %v310, %v483
        %485 = vmatprep.mubr.f32.mxu0 0.0
        %486 = vmatmul.mubr.f32.gmra.mrb[0].mxu0 %v362
        %v487 = vpop.f32.mrb[0].mxu0
        %v488 = vadd.f32 %v312, %v487
        %v489 = vpop.f32.mrb[0].mxu0
        %v490 = vadd.f32 %v313, %v489
        %491 = vmatprep.mubr.f32.mxu0 0.0
        %492 = vmatmul.mubr.f32.gmra.mrb[0].mxu0 %v365
        %v493 = vpop.f32.mrb[0].mxu0
        %v494 = vadd.f32 %v315, %v493
        %v495 = vpop.f32.mrb[0].mxu0
        %v496 = vadd.f32 %v316, %v495
        %497 = vmatprep.mubr.f32.mxu0 0.0
        %498 = vmatmul.mubr.f32.gmra.mrb[0].mxu0 %v368
        %v499 = vpop.f32.mrb[0].mxu0
        %v500 = vadd.f32 %v318, %v499
        %v501 = vpop.f32.mrb[0].mxu0
        %v502 = vadd.f32 %v319, %v501
        %503 = vmatprep.mubr.f32.mxu0 0.0
        %504 = vmatmul.mubr.f32.gmra.mrb[0].mxu0 %v371
        %v505 = vpop.f32.mrb[0].mxu0
        %v506 = vadd.f32 %v321, %v505
        %v507 = vpop.f32.mrb[0].mxu0
        %v508 = vadd.f32 %v322, %v507
        %509 = vmatprep.mubr.f32.mxu0 0.0
        %510 = vmatmul.mubr.f32.gmra.mrb[0].mxu0 %v374
        %v511 = vpop.f32.mrb[0].mxu0
        %v512 = vadd.f32 %v324, %v511
        %v513 = vpop.f32.mrb[0].mxu0
        %v514 = vadd.f32 %v325, %v513
        %515 = vmatprep.mubr.f32.mxu0 0.0
        %516 = vmatmul.mubr.f32.gmra.mrb[0].mxu0 %v377
        %v517 = vpop.f32.mrb[0].mxu0
        %v518 = vadd.f32 %v327, %v517
        %v519 = vpop.f32.mrb[0].mxu0
        %v520 = vadd.f32 %v328, %v519
        %521 = vmatprep.mubr.f32.mxu0 0.0
        %522 = vmatmul.mubr.f32.gmra.mrb[0].mxu0 %v380
        %v523 = vpop.f32.mrb[0].mxu0
        %v524 = vadd.f32 %v330, %v523
        %v525 = vpop.f32.mrb[0].mxu0
        %v526 = vadd.f32 %v331, %v525
        %527 = vmatprep.mubr.f32.mxu0 0.0
        %528 = vmatmul.mubr.f32.gmra.mrb[0].mxu0 %v383
        %v529 = vpop.f32.mrb[0].mxu0
        %v530 = vadd.f32 %v333, %v529
        %v531 = vpop.f32.mrb[0].mxu0
        %v532 = vadd.f32 %v334, %v531
        %533 = vmatprep.mubr.f32.mxu0 0.0
        %534 = vmatmul.mubr.f32.gmra.mrb[0].mxu0 %v386
        %v535 = vpop.f32.mrb[0].mxu0
        %v536 = vadd.f32 %v336, %v535
        %v537 = vpop.f32.mrb[0].mxu0
        %v538 = vadd.f32 %v337, %v537
        %539 = vmatprep.mubr.f32.mxu0 0.0
        %540 = vmatmul.mubr.f32.gmra.mrb[0].mxu0 %v389
        %v541 = vpop.f32.mrb[0].mxu0
        %v542 = vadd.f32 %v339, %v541
        %v543 = vpop.f32.mrb[0].mxu0
        %v544 = vadd.f32 %v340, %v543
        %545 = vmatprep.mubr.f32.mxu0 0.0
        %546 = vmatmul.mubr.f32.gmra.mrb[0].mxu0 %v392
        %v547 = vpop.f32.mrb[0].mxu0
        %v548 = vadd.f32 %v342, %v547
        %v549 = vpop.f32.mrb[0].mxu0
        %v550 = vadd.f32 %v343, %v549
        %551 = vmatprep.mubr.f32.mxu0 0.0
        %552 = vmatmul.mubr.f32.gmra.mrb[0].mxu0 %v395
        %v553 = vpop.f32.mrb[0].mxu0
        %v554 = vadd.f32 %v345, %v553
        %v555 = vpop.f32.mrb[0].mxu0
        %v556 = vadd.f32 %v346, %v555
        %557 = vdwg.mxu0
        %558 = vmatprep.subr.mxu0 0.0
        %559 = vmatpush1.msra.mxu0 %v290
        %560 = vmatprep.subr.mxu0 0.0
        %561 = vmatpush1.msra.mxu0 %v293
        %562 = vmatprep.subr.mxu0 0.0
        %563 = vmatpush1.msra.mxu0 %v296
        %564 = vmatprep.subr.mxu0 0.0
        %565 = vmatpush1.msra.mxu0 %v299
        %566 = vmatprep.subr.mxu0 0.0
        %567 = vmatpush1.msra.mxu0 0.0
        %568 = vmatprep.subr.mxu0 0.0
        %569 = vmatpush1.msra.mxu0 0.0
        %570 = vmatprep.subr.mxu0 0.0
        %571 = vmatpush1.msra.mxu0 0.0
        %572 = vmatprep.subr.mxu0 0.0
        %573 = vmatpush1.msra.mxu0 0.0
        %574 = vmatprep.subr.mxu0 0.0
        %575 = vmatpush1.msra.mxu0 0.0
        %576 = vmatprep.subr.mxu0 0.0
        %577 = vmatpush1.msra.mxu0 0.0
        %578 = vmatprep.subr.mxu0 0.0
        %579 = vmatpush1.msra.mxu0 0.0
        %580 = vmatprep.subr.mxu0 0.0
        %581 = vmatpush1.msra.mxu0 0.0
        %582 = vmatprep.subr.mxu0 0.0
        %583 = vmatpush1.msra.mxu0 0.0
        %584 = vmatprep.subr.mxu0 0.0
        %585 = vmatpush1.msra.mxu0 0.0
        %586 = vmatprep.subr.mxu0 0.0
        %587 = vmatpush1.msra.mxu0 0.0
        %588 = vmatprep.subr.mxu0 0.0
        %589 = vmatpush1.msra.mxu0 0.0
        %590 = vmatprep.subr.mxu0 0.0
        %591 = vmatpush1.msra.mxu0 0.0
        %592 = vmatprep.subr.mxu0 0.0
        %593 = vmatpush1.msra.mxu0 0.0
        %594 = vmatprep.subr.mxu0 0.0
        %595 = vmatpush1.msra.mxu0 0.0
        %596 = vmatprep.subr.mxu0 0.0
        %597 = vmatpush1.msra.mxu0 0.0
        %598 = vmatprep.subr.mxu0 0.0
        %599 = vmatpush1.msra.mxu0 0.0
        %600 = vmatprep.subr.mxu0 0.0
        %601 = vmatpush1.msra.mxu0 0.0
        %602 = vmatprep.subr.mxu0 0.0
        %603 = vmatpush1.msra.mxu0 0.0
        %604 = vmatprep.subr.mxu0 0.0
        %605 = vmatpush1.msra.mxu0 0.0
        %606 = vmatprep.subr.mxu0 0.0
        %607 = vmatpush1.msra.mxu0 0.0
        %608 = vmatprep.subr.mxu0 0.0
        %609 = vmatpush1.msra.mxu0 0.0
        %610 = vmatprep.subr.mxu0 0.0
        %611 = vmatpush1.msra.mxu0 0.0
        %612 = vmatprep.subr.mxu0 0.0
        %613 = vmatpush1.msra.mxu0 0.0
        %614 = vmatprep.subr.mxu0 0.0
        %615 = vmatpush1.msra.mxu0 0.0
        %616 = vmatprep.subr.mxu0 0.0
        %617 = vmatpush1.msra.mxu0 0.0
        %618 = vmatprep.subr.mxu0 0.0
        %619 = vmatpush1.msra.mxu0 0.0
        %620 = vmatprep.subr.mxu0 0.0
        %621 = vmatpush1.msra.mxu0 0.0
        %622 = vmatprep.mubr.f32.mxu0 0.0
        %623 = vmatmul.mubr.f32.gmra.mrb[0].mxu0 %v350
        %v624 = vpop.f32.mrb[0].mxu0
        %v625 = vadd.f32 %v302, %v624
        %v626 = vpop.f32.mrb[0].mxu0
        %627 = vmatprep.mubr.f32.mxu0 0.0
        %628 = vmatmul.mubr.f32.gmra.mrb[0].mxu0 %v353
        %v629 = vpop.f32.mrb[0].mxu0
        %v630 = vadd.f32 %v305, %v629
        %v631 = vpop.f32.mrb[0].mxu0
        %632 = vmatprep.mubr.f32.mxu0 0.0
        %633 = vmatmul.mubr.f32.gmra.mrb[0].mxu0 %v356
        %v634 = vpop.f32.mrb[0].mxu0
        %v635 = vadd.f32 %v308, %v634
        %v636 = vpop.f32.mrb[0].mxu0
        %637 = vmatprep.mubr.f32.mxu0 0.0
        %638 = vmatmul.mubr.f32.gmra.mrb[0].mxu0 %v359
        %v639 = vpop.f32.mrb[0].mxu0
        %v640 = vadd.f32 %v311, %v639
        %v641 = vpop.f32.mrb[0].mxu0
        %642 = vmatprep.mubr.f32.mxu0 0.0
        %643 = vmatmul.mubr.f32.gmra.mrb[0].mxu0 %v362
        %v644 = vpop.f32.mrb[0].mxu0
        %v645 = vadd.f32 %v314, %v644
        %v646 = vpop.f32.mrb[0].mxu0
        %647 = vmatprep.mubr.f32.mxu0 0.0
        %648 = vmatmul.mubr.f32.gmra.mrb[0].mxu0 %v365
        %v649 = vpop.f32.mrb[0].mxu0
        %v650 = vadd.f32 %v317, %v649
        %v651 = vpop.f32.mrb[0].mxu0
        %652 = vmatprep.mubr.f32.mxu0 0.0
        %653 = vmatmul.mubr.f32.gmra.mrb[0].mxu0 %v368
        %v654 = vpop.f32.mrb[0].mxu0
        %v655 = vadd.f32 %v320, %v654
        %v656 = vpop.f32.mrb[0].mxu0
        %657 = vmatprep.mubr.f32.mxu0 0.0
        %658 = vmatmul.mubr.f32.gmra.mrb[0].mxu0 %v371
        %v659 = vpop.f32.mrb[0].mxu0
        %v660 = vadd.f32 %v323, %v659
        %v661 = vpop.f32.mrb[0].mxu0
        %662 = vmatprep.mubr.f32.mxu0 0.0
        %663 = vmatmul.mubr.f32.gmra.mrb[0].mxu0 %v374
        %v664 = vpop.f32.mrb[0].mxu0
        %v665 = vadd.f32 %v326, %v664
        %v666 = vpop.f32.mrb[0].mxu0
        %667 = vmatprep.mubr.f32.mxu0 0.0
        %668 = vmatmul.mubr.f32.gmra.mrb[0].mxu0 %v377
        %v669 = vpop.f32.mrb[0].mxu0
        %v670 = vadd.f32 %v329, %v669
        %v671 = vpop.f32.mrb[0].mxu0
        %672 = vmatprep.mubr.f32.mxu0 0.0
        %673 = vmatmul.mubr.f32.gmra.mrb[0].mxu0 %v380
        %v674 = vpop.f32.mrb[0].mxu0
        %v675 = vadd.f32 %v332, %v674
        %v676 = vpop.f32.mrb[0].mxu0
        %677 = vmatprep.mubr.f32.mxu0 0.0
        %678 = vmatmul.mubr.f32.gmra.mrb[0].mxu0 %v383
        %v679 = vpop.f32.mrb[0].mxu0
        %v680 = vadd.f32 %v335, %v679
        %v681 = vpop.f32.mrb[0].mxu0
        %682 = vmatprep.mubr.f32.mxu0 0.0
        %683 = vmatmul.mubr.f32.gmra.mrb[0].mxu0 %v386
        %v684 = vpop.f32.mrb[0].mxu0
        %v685 = vadd.f32 %v338, %v684
        %v686 = vpop.f32.mrb[0].mxu0
        %687 = vmatprep.mubr.f32.mxu0 0.0
        %688 = vmatmul.mubr.f32.gmra.mrb[0].mxu0 %v389
        %v689 = vpop.f32.mrb[0].mxu0
        %v690 = vadd.f32 %v341, %v689
        %v691 = vpop.f32.mrb[0].mxu0
        %692 = vmatprep.mubr.f32.mxu0 0.0
        %693 = vmatmul.mubr.f32.gmra.mrb[0].mxu0 %v392
        %v694 = vpop.f32.mrb[0].mxu0
        %v695 = vadd.f32 %v344, %v694
        %v696 = vpop.f32.mrb[0].mxu0
        %697 = vmatprep.mubr.f32.mxu0 0.0
        %698 = vmatmul.mubr.f32.gmra.mrb[0].mxu0 %v395
        %v699 = vpop.f32.mrb[0].mxu0
        %v700 = vadd.f32 %v347, %v699
        %v701 = vpop.f32.mrb[0].mxu0
        %702 = vdwg.mxu0
        %v703 = vmax.f32 %v464, %v466
        %v704 = vmax.f32 %v703, %v625
        %705 = vmax.xlane.f32.xlu0 %v704
        %v706 = vpop.xlane.xlu0 %705
        %v707 = vmax.f32 %v470, %v472
        %v708 = vmax.f32 %v707, %v630
        %709 = vmax.xlane.f32.xlu0 %v708
        %v710 = vpop.xlane.xlu0 %709
        %v711 = vmax.f32 %v476, %v478
        %v712 = vmax.f32 %v711, %v635
        %713 = vmax.xlane.f32.xlu0 %v712
        %v714 = vpop.xlane.xlu0 %713
        %v715 = vmax.f32 %v482, %v484
        %v716 = vmax.f32 %v715, %v640
        %717 = vmax.xlane.f32.xlu0 %v716
        %v718 = vpop.xlane.xlu0 %717
        %v719 = vmax.f32 %v488, %v490
        %v720 = vmax.f32 %v719, %v645
        %721 = vmax.xlane.f32.xlu0 %v720
        %v722 = vpop.xlane.xlu0 %721
        %v723 = vmax.f32 %v494, %v496
        %v724 = vmax.f32 %v723, %v650
        %725 = vmax.xlane.f32.xlu0 %v724
        %v726 = vpop.xlane.xlu0 %725
        %v727 = vmax.f32 %v500, %v502
        %v728 = vmax.f32 %v727, %v655
        %729 = vmax.xlane.f32.xlu0 %v728
        %v730 = vpop.xlane.xlu0 %729
        %v731 = vmax.f32 %v506, %v508
        %v732 = vmax.f32 %v731, %v660
        %733 = vmax.xlane.f32.xlu0 %v732
        %v734 = vpop.xlane.xlu0 %733
        %v735 = vmax.f32 %v512, %v514
        %v736 = vmax.f32 %v735, %v665
        %737 = vmax.xlane.f32.xlu0 %v736
        %v738 = vpop.xlane.xlu0 %737
        %v739 = vmax.f32 %v518, %v520
        %v740 = vmax.f32 %v739, %v670
        %741 = vmax.xlane.f32.xlu0 %v740
        %v742 = vpop.xlane.xlu0 %741
        %v743 = vmax.f32 %v524, %v526
        %v744 = vmax.f32 %v743, %v675
        %745 = vmax.xlane.f32.xlu0 %v744
        %v746 = vpop.xlane.xlu0 %745
        %v747 = vmax.f32 %v530, %v532
        %v748 = vmax.f32 %v747, %v680
        %749 = vmax.xlane.f32.xlu0 %v748
        %v750 = vpop.xlane.xlu0 %749
        %v751 = vmax.f32 %v536, %v538
        %v752 = vmax.f32 %v751, %v685
        %753 = vmax.xlane.f32.xlu0 %v752
        %v754 = vpop.xlane.xlu0 %753
        %v755 = vmax.f32 %v542, %v544
        %v756 = vmax.f32 %v755, %v690
        %757 = vmax.xlane.f32.xlu0 %v756
        %v758 = vpop.xlane.xlu0 %757
        %v759 = vmax.f32 %v548, %v550
        %v760 = vmax.f32 %v759, %v695
        %761 = vmax.xlane.f32.xlu0 %v760
        %v762 = vpop.xlane.xlu0 %761
        %v763 = vmax.f32 %v554, %v556
        %v764 = vmax.f32 %v763, %v700
        %765 = vmax.xlane.f32.xlu0 %v764
        %v766 = vpop.xlane.xlu0 %765
        %v767 = vmax.f32 %v706, -1e+30
        %v768 = vmax.f32 %v710, -1e+30
        %v769 = vmax.f32 %v714, -1e+30
        %v770 = vmax.f32 %v718, -1e+30
        %v771 = vmax.f32 %v722, -1e+30
        %v772 = vmax.f32 %v726, -1e+30
        %v773 = vmax.f32 %v730, -1e+30
        %v774 = vmax.f32 %v734, -1e+30
        %v775 = vmax.f32 %v738, -1e+30
        %v776 = vmax.f32 %v742, -1e+30
        %v777 = vmax.f32 %v746, -1e+30
        %v778 = vmax.f32 %v750, -1e+30
        %v779 = vmax.f32 %v754, -1e+30
        %v780 = vmax.f32 %v758, -1e+30
        %v781 = vmax.f32 %v762, -1e+30
        %v782 = vmax.f32 %v766, -1e+30
        %v783 = vsub.f32 %v464, %v767
        %v784 = vsub.f32 %v466, %v767
        %v785 = vsub.f32 %v625, %v767
        %v786 = vsub.f32 %v470, %v768
        %v787 = vsub.f32 %v472, %v768
        %v788 = vsub.f32 %v630, %v768
        %v789 = vsub.f32 %v476, %v769
        %v790 = vsub.f32 %v478, %v769
        %v791 = vsub.f32 %v635, %v769
        %v792 = vsub.f32 %v482, %v770
        %v793 = vsub.f32 %v484, %v770
        %v794 = vsub.f32 %v640, %v770
        %v795 = vsub.f32 %v488, %v771
        %v796 = vsub.f32 %v490, %v771
        %v797 = vsub.f32 %v645, %v771
        %v798 = vsub.f32 %v494, %v772
        %v799 = vsub.f32 %v496, %v772
        %v800 = vsub.f32 %v650, %v772
        %v801 = vsub.f32 %v500, %v773
        %v802 = vsub.f32 %v502, %v773
        %v803 = vsub.f32 %v655, %v773
        %v804 = vsub.f32 %v506, %v774
        %v805 = vsub.f32 %v508, %v774
        %v806 = vsub.f32 %v660, %v774
        %v807 = vsub.f32 %v512, %v775
        %v808 = vsub.f32 %v514, %v775
        %v809 = vsub.f32 %v665, %v775
        %v810 = vsub.f32 %v518, %v776
        %v811 = vsub.f32 %v520, %v776
        %v812 = vsub.f32 %v670, %v776
        %v813 = vsub.f32 %v524, %v777
        %v814 = vsub.f32 %v526, %v777
        %v815 = vsub.f32 %v675, %v777
        %v816 = vsub.f32 %v530, %v778
        %v817 = vsub.f32 %v532, %v778
        %v818 = vsub.f32 %v680, %v778
        %v819 = vsub.f32 %v536, %v779
        %v820 = vsub.f32 %v538, %v779
        %v821 = vsub.f32 %v685, %v779
        %v822 = vsub.f32 %v542, %v780
        %v823 = vsub.f32 %v544, %v780
        %v824 = vsub.f32 %v690, %v780
        %v825 = vsub.f32 %v548, %v781
        %v826 = vsub.f32 %v550, %v781
        %v827 = vsub.f32 %v695, %v781
        %v828 = vsub.f32 %v554, %v782
        %v829 = vsub.f32 %v556, %v782
        %v830 = vsub.f32 %v700, %v782
        %v831 = vmul.f32 %v783, 1.442695
        %v832 = vpow.pop %v831
        %v833 = vmul.f32 %v784, 1.442695
        %v834 = vpow.pop %v833
        %v835 = vmul.f32 %v785, 1.442695
        %v836 = vpow.pop %v835
        %v837 = vmul.f32 %v786, 1.442695
        %v838 = vpow.pop %v837
        %v839 = vmul.f32 %v787, 1.442695
        %v840 = vpow.pop %v839
        %v841 = vmul.f32 %v788, 1.442695
        %v842 = vpow.pop %v841
        %v843 = vmul.f32 %v789, 1.442695
        %v844 = vpow.pop %v843
        %v845 = vmul.f32 %v790, 1.442695
        %v846 = vpow.pop %v845
        %v847 = vmul.f32 %v791, 1.442695
        %v848 = vpow.pop %v847
        %v849 = vmul.f32 %v792, 1.442695
        %v850 = vpow.pop %v849
        %v851 = vmul.f32 %v793, 1.442695
        %v852 = vpow.pop %v851
        %v853 = vmul.f32 %v794, 1.442695
        %v854 = vpow.pop %v853
        %v855 = vmul.f32 %v795, 1.442695
        %v856 = vpow.pop %v855
        %v857 = vmul.f32 %v796, 1.442695
        %v858 = vpow.pop %v857
        %v859 = vmul.f32 %v797, 1.442695
        %v860 = vpow.pop %v859
        %v861 = vmul.f32 %v798, 1.442695
        %v862 = vpow.pop %v861
        %v863 = vmul.f32 %v799, 1.442695
        %v864 = vpow.pop %v863
        %v865 = vmul.f32 %v800, 1.442695
        %v866 = vpow.pop %v865
        %v867 = vmul.f32 %v801, 1.442695
        %v868 = vpow.pop %v867
        %v869 = vmul.f32 %v802, 1.442695
        %v870 = vpow.pop %v869
        %v871 = vmul.f32 %v803, 1.442695
        %v872 = vpow.pop %v871
        %v873 = vmul.f32 %v804, 1.442695
        %v874 = vpow.pop %v873
        %v875 = vmul.f32 %v805, 1.442695
        %v876 = vpow.pop %v875
        %v877 = vmul.f32 %v806, 1.442695
        %v878 = vpow.pop %v877
        %v879 = vmul.f32 %v807, 1.442695
        %v880 = vpow.pop %v879
        %v881 = vmul.f32 %v808, 1.442695
        %v882 = vpow.pop %v881
        %v883 = vmul.f32 %v809, 1.442695
        %v884 = vpow.pop %v883
        %v885 = vmul.f32 %v810, 1.442695
        %v886 = vpow.pop %v885
        %v887 = vmul.f32 %v811, 1.442695
        %v888 = vpow.pop %v887
        %v889 = vmul.f32 %v812, 1.442695
        %v890 = vpow.pop %v889
        %v891 = vmul.f32 %v813, 1.442695
        %v892 = vpow.pop %v891
        %v893 = vmul.f32 %v814, 1.442695
        %v894 = vpow.pop %v893
        %v895 = vmul.f32 %v815, 1.442695
        %v896 = vpow.pop %v895
        %v897 = vmul.f32 %v816, 1.442695
        %v898 = vpow.pop %v897
        %v899 = vmul.f32 %v817, 1.442695
        %v900 = vpow.pop %v899
        %v901 = vmul.f32 %v818, 1.442695
        %v902 = vpow.pop %v901
        %v903 = vmul.f32 %v819, 1.442695
        %v904 = vpow.pop %v903
        %v905 = vmul.f32 %v820, 1.442695
        %v906 = vpow.pop %v905
        %v907 = vmul.f32 %v821, 1.442695
        %v908 = vpow.pop %v907
        %v909 = vmul.f32 %v822, 1.442695
        %v910 = vpow.pop %v909
        %v911 = vmul.f32 %v823, 1.442695
        %v912 = vpow.pop %v911
        %v913 = vmul.f32 %v824, 1.442695
        %v914 = vpow.pop %v913
        %v915 = vmul.f32 %v825, 1.442695
        %v916 = vpow.pop %v915
        %v917 = vmul.f32 %v826, 1.442695
        %v918 = vpow.pop %v917
        %v919 = vmul.f32 %v827, 1.442695
        %v920 = vpow.pop %v919
        %v921 = vmul.f32 %v828, 1.442695
        %v922 = vpow.pop %v921
        %v923 = vmul.f32 %v829, 1.442695
        %v924 = vpow.pop %v923
        %v925 = vmul.f32 %v830, 1.442695
        %v926 = vpow.pop %v925
        %v927 = vadd.f32 %v832, %v834
        %v928 = vadd.f32 %v927, %v836
        %929 = vadd.xlane.f32.xlu0 %v928
        %v930 = vpop.xlane.xlu0 %929
        %v931 = vadd.f32 %v838, %v840
        %v932 = vadd.f32 %v931, %v842
        %933 = vadd.xlane.f32.xlu0 %v932
        %v934 = vpop.xlane.xlu0 %933
        %v935 = vadd.f32 %v844, %v846
        %v936 = vadd.f32 %v935, %v848
        %937 = vadd.xlane.f32.xlu0 %v936
        %v938 = vpop.xlane.xlu0 %937
        %v939 = vadd.f32 %v850, %v852
        %v940 = vadd.f32 %v939, %v854
        %941 = vadd.xlane.f32.xlu0 %v940
        %v942 = vpop.xlane.xlu0 %941
        %v943 = vadd.f32 %v856, %v858
        %v944 = vadd.f32 %v943, %v860
        %945 = vadd.xlane.f32.xlu0 %v944
        %v946 = vpop.xlane.xlu0 %945
        %v947 = vadd.f32 %v862, %v864
        %v948 = vadd.f32 %v947, %v866
        %949 = vadd.xlane.f32.xlu0 %v948
        %v950 = vpop.xlane.xlu0 %949
        %v951 = vadd.f32 %v868, %v870
        %v952 = vadd.f32 %v951, %v872
        %953 = vadd.xlane.f32.xlu0 %v952
        %v954 = vpop.xlane.xlu0 %953
        %v955 = vadd.f32 %v874, %v876
        %v956 = vadd.f32 %v955, %v878
        %957 = vadd.xlane.f32.xlu0 %v956
        %v958 = vpop.xlane.xlu0 %957
        %v959 = vadd.f32 %v880, %v882
        %v960 = vadd.f32 %v959, %v884
        %961 = vadd.xlane.f32.xlu0 %v960
        %v962 = vpop.xlane.xlu0 %961
        %v963 = vadd.f32 %v886, %v888
        %v964 = vadd.f32 %v963, %v890
        %965 = vadd.xlane.f32.xlu0 %v964
        %v966 = vpop.xlane.xlu0 %965
        %v967 = vadd.f32 %v892, %v894
        %v968 = vadd.f32 %v967, %v896
        %969 = vadd.xlane.f32.xlu0 %v968
        %v970 = vpop.xlane.xlu0 %969
        %v971 = vadd.f32 %v898, %v900
        %v972 = vadd.f32 %v971, %v902
        %973 = vadd.xlane.f32.xlu0 %v972
        %v974 = vpop.xlane.xlu0 %973
        %v975 = vadd.f32 %v904, %v906
        %v976 = vadd.f32 %v975, %v908
        %977 = vadd.xlane.f32.xlu0 %v976
        %v978 = vpop.xlane.xlu0 %977
        %v979 = vadd.f32 %v910, %v912
        %v980 = vadd.f32 %v979, %v914
        %981 = vadd.xlane.f32.xlu0 %v980
        %v982 = vpop.xlane.xlu0 %981
        %v983 = vadd.f32 %v916, %v918
        %v984 = vadd.f32 %v983, %v920
        %985 = vadd.xlane.f32.xlu0 %v984
        %v986 = vpop.xlane.xlu0 %985
        %v987 = vadd.f32 %v922, %v924
        %v988 = vadd.f32 %v987, %v926
        %989 = vadd.xlane.f32.xlu0 %v988
        %v990 = vpop.xlane.xlu0 %989
        %v991 = vld [vmem:[#allocation2] sm:$0xff]
        %v992 = vld [vmem:[#allocation2 + $0x8] sm:$0xff]
        %v993 = vld [vmem:[#allocation2 + $0x10] sm:$0xff]
        %v994 = vld [vmem:[#allocation2 + $0x18] sm:$0xff]
        %v995 = vld [vmem:[#allocation2 + $0x20] sm:$0xff]
        %v996 = vld [vmem:[#allocation2 + $0x28] sm:$0xff]
        %v997 = vld [vmem:[#allocation2 + $0x30] sm:$0xff]
        %v998 = vld [vmem:[#allocation2 + $0x38] sm:$0xff]
        %v999 = vld [vmem:[#allocation2 + $0x40] sm:$0xff]
        %v1000 = vld [vmem:[#allocation2 + $0x48] sm:$0xff]
        %v1001 = vld [vmem:[#allocation2 + $0x50] sm:$0xff]
        %v1002 = vld [vmem:[#allocation2 + $0x58] sm:$0xff]
        %v1003 = vld [vmem:[#allocation2 + $0x60] sm:$0xff]
        %v1004 = vld [vmem:[#allocation2 + $0x68] sm:$0xff]
        %v1005 = vld [vmem:[#allocation2 + $0x70] sm:$0xff]
        %v1006 = vld [vmem:[#allocation2 + $0x78] sm:$0xff]
        %v1007 = vld [vmem:[#allocation2 + $0x80] sm:$0xff]
        %v1008 = vld [vmem:[#allocation2 + $0x88] sm:$0xff]
        %v1009 = vld [vmem:[#allocation2 + $0x90] sm:$0xff]
        %v1010 = vld [vmem:[#allocation2 + $0x98] sm:$0xff]
        %v1011 = vld [vmem:[#allocation2 + $0xa0] sm:$0xff]
        %v1012 = vld [vmem:[#allocation2 + $0xa8] sm:$0xff]
        %v1013 = vld [vmem:[#allocation2 + $0xb0] sm:$0xff]
        %v1014 = vld [vmem:[#allocation2 + $0xb8] sm:$0xff]
        %v1015 = vld [vmem:[#allocation2 + $0xc0] sm:$0xff]
        %v1016 = vld [vmem:[#allocation2 + $0xc8] sm:$0xff]
        %v1017 = vld [vmem:[#allocation2 + $0xd0] sm:$0xff]
        %v1018 = vld [vmem:[#allocation2 + $0xd8] sm:$0xff]
        %v1019 = vld [vmem:[#allocation2 + $0xe0] sm:$0xff]
        %v1020 = vld [vmem:[#allocation2 + $0xe8] sm:$0xff]
        %v1021 = vld [vmem:[#allocation2 + $0xf0] sm:$0xff]
        %v1022 = vld [vmem:[#allocation2 + $0xf8] sm:$0xff]
        %v1023 = vld [vmem:[#allocation2 + $0x100] sm:$0xff]
        %v1024 = vld [vmem:[#allocation2 + $0x108] sm:$0xff]
        %v1025 = vld [vmem:[#allocation2 + $0x110] sm:$0xff]
        %v1026 = vld [vmem:[#allocation2 + $0x118] sm:$0xff]
        %v1027 = vld [vmem:[#allocation2 + $0x120] sm:$0xff]
        %v1028 = vld [vmem:[#allocation2 + $0x128] sm:$0xff]
        %v1029 = vld [vmem:[#allocation2 + $0x130] sm:$0xff]
        %v1030 = vld [vmem:[#allocation2 + $0x138] sm:$0xff]
        %v1031 = vld [vmem:[#allocation2 + $0x140] sm:$0xff]
        %v1032 = vld [vmem:[#allocation2 + $0x148] sm:$0xff]
        %v1033 = vld [vmem:[#allocation2 + $0x150] sm:$0xff]
        %v1034 = vld [vmem:[#allocation2 + $0x158] sm:$0xff]
        %v1035 = vld [vmem:[#allocation2 + $0x160] sm:$0xff]
        %v1036 = vld [vmem:[#allocation2 + $0x168] sm:$0xff]
        %v1037 = vld [vmem:[#allocation2 + $0x170] sm:$0xff]
        %v1038 = vld [vmem:[#allocation2 + $0x178] sm:$0xff]
        %1039 = vmatprep.subr.mxu0 0.0
        %1040 = vmatpush1.msra.mxu0 %v991
        %1041 = vmatprep.subr.mxu0 0.0
        %1042 = vmatpush1.msra.mxu0 %v992
        %1043 = vmatprep.subr.mxu0 0.0
        %1044 = vmatpush1.msra.mxu0 %v993
        %1045 = vmatprep.subr.mxu0 0.0
        %1046 = vmatpush1.msra.mxu0 %v994
        %1047 = vmatprep.subr.mxu0 0.0
        %1048 = vmatpush1.msra.mxu0 %v995
        %1049 = vmatprep.subr.mxu0 0.0
        %1050 = vmatpush1.msra.mxu0 %v996
        %1051 = vmatprep.subr.mxu0 0.0
        %1052 = vmatpush1.msra.mxu0 %v997
        %1053 = vmatprep.subr.mxu0 0.0
        %1054 = vmatpush1.msra.mxu0 %v998
        %1055 = vmatprep.subr.mxu0 0.0
        %1056 = vmatpush1.msra.mxu0 %v999
        %1057 = vmatprep.subr.mxu0 0.0
        %1058 = vmatpush1.msra.mxu0 %v1000
        %1059 = vmatprep.subr.mxu0 0.0
        %1060 = vmatpush1.msra.mxu0 %v1001
        %1061 = vmatprep.subr.mxu0 0.0
        %1062 = vmatpush1.msra.mxu0 %v1002
        %1063 = vmatprep.subr.mxu0 0.0
        %1064 = vmatpush1.msra.mxu0 %v1003
        %1065 = vmatprep.subr.mxu0 0.0
        %1066 = vmatpush1.msra.mxu0 %v1004
        %1067 = vmatprep.subr.mxu0 0.0
        %1068 = vmatpush1.msra.mxu0 %v1005
        %1069 = vmatprep.subr.mxu0 0.0
        %1070 = vmatpush1.msra.mxu0 %v1006
        %1071 = vmatprep.subr.mxu0 0.0
        %1072 = vmatpush1.msra.mxu0 %v1007
        %1073 = vmatprep.subr.mxu0 0.0
        %1074 = vmatpush1.msra.mxu0 %v1008
        %1075 = vmatprep.subr.mxu0 0.0
        %1076 = vmatpush1.msra.mxu0 %v1009
        %1077 = vmatprep.subr.mxu0 0.0
        %1078 = vmatpush1.msra.mxu0 %v1010
        %1079 = vmatprep.subr.mxu0 0.0
        %1080 = vmatpush1.msra.mxu0 %v1011
        %1081 = vmatprep.subr.mxu0 0.0
        %1082 = vmatpush1.msra.mxu0 %v1012
        %1083 = vmatprep.subr.mxu0 0.0
        %1084 = vmatpush1.msra.mxu0 %v1013
        %1085 = vmatprep.subr.mxu0 0.0
        %1086 = vmatpush1.msra.mxu0 %v1014
        %1087 = vmatprep.subr.mxu0 0.0
        %1088 = vmatpush1.msra.mxu0 %v1015
        %1089 = vmatprep.subr.mxu0 0.0
        %1090 = vmatpush1.msra.mxu0 %v1016
        %1091 = vmatprep.subr.mxu0 0.0
        %1092 = vmatpush1.msra.mxu0 %v1017
        %1093 = vmatprep.subr.mxu0 0.0
        %1094 = vmatpush1.msra.mxu0 %v1018
        %1095 = vmatprep.subr.mxu0 0.0
        %1096 = vmatpush1.msra.mxu0 %v1019
        %1097 = vmatprep.subr.mxu0 0.0
        %1098 = vmatpush1.msra.mxu0 %v1020
        %1099 = vmatprep.subr.mxu0 0.0
        %1100 = vmatpush1.msra.mxu0 %v1021
        %1101 = vmatprep.subr.mxu0 0.0
        %1102 = vmatpush1.msra.mxu0 %v1022
        %1103 = vmatprep.mubr.f32.mxu0 %v834
        %1104 = vmatmul.mubr.f32.gmra.mrb[0].mxu0 %v832
        %v1105 = vpop.f32.mrb[0].mxu0
        %v1106 = vadd.f32 0.0, %v1105
        %v1107 = vpop.f32.mrb[0].mxu0
        %1108 = vmatprep.mubr.f32.mxu0 %v840
        %1109 = vmatmul.mubr.f32.gmra.mrb[0].mxu0 %v838
        %v1110 = vpop.f32.mrb[0].mxu0
        %v1111 = vadd.f32 0.0, %v1110
        %v1112 = vpop.f32.mrb[0].mxu0
        %1113 = vmatprep.mubr.f32.mxu0 %v846
        %1114 = vmatmul.mubr.f32.gmra.mrb[0].mxu0 %v844
        %v1115 = vpop.f32.mrb[0].mxu0
        %v1116 = vadd.f32 0.0, %v1115
        %v1117 = vpop.f32.mrb[0].mxu0
        %1118 = vmatprep.mubr.f32.mxu0 %v852
        %1119 = vmatmul.mubr.f32.gmra.mrb[0].mxu0 %v850
        %v1120 = vpop.f32.mrb[0].mxu0
        %v1121 = vadd.f32 0.0, %v1120
        %v1122 = vpop.f32.mrb[0].mxu0
        %1123 = vmatprep.mubr.f32.mxu0 %v858
        %1124 = vmatmul.mubr.f32.gmra.mrb[0].mxu0 %v856
        %v1125 = vpop.f32.mrb[0].mxu0
        %v1126 = vadd.f32 0.0, %v1125
        %v1127 = vpop.f32.mrb[0].mxu0
        %1128 = vmatprep.mubr.f32.mxu0 %v864
        %1129 = vmatmul.mubr.f32.gmra.mrb[0].mxu0 %v862
        %v1130 = vpop.f32.mrb[0].mxu0
        %v1131 = vadd.f32 0.0, %v1130
        %v1132 = vpop.f32.mrb[0].mxu0
        %1133 = vmatprep.mubr.f32.mxu0 %v870
        %1134 = vmatmul.mubr.f32.gmra.mrb[0].mxu0 %v868
        %v1135 = vpop.f32.mrb[0].mxu0
        %v1136 = vadd.f32 0.0, %v1135
        %v1137 = vpop.f32.mrb[0].mxu0
        %1138 = vmatprep.mubr.f32.mxu0 %v876
        %1139 = vmatmul.mubr.f32.gmra.mrb[0].mxu0 %v874
        %v1140 = vpop.f32.mrb[0].mxu0
        %v1141 = vadd.f32 0.0, %v1140
        %v1142 = vpop.f32.mrb[0].mxu0
        %1143 = vmatprep.mubr.f32.mxu0 %v882
        %1144 = vmatmul.mubr.f32.gmra.mrb[0].mxu0 %v880
        %v1145 = vpop.f32.mrb[0].mxu0
        %v1146 = vadd.f32 0.0, %v1145
        %v1147 = vpop.f32.mrb[0].mxu0
        %1148 = vmatprep.mubr.f32.mxu0 %v888
        %1149 = vmatmul.mubr.f32.gmra.mrb[0].mxu0 %v886
        %v1150 = vpop.f32.mrb[0].mxu0
        %v1151 = vadd.f32 0.0, %v1150
        %v1152 = vpop.f32.mrb[0].mxu0
        %1153 = vmatprep.mubr.f32.mxu0 %v894
        %1154 = vmatmul.mubr.f32.gmra.mrb[0].mxu0 %v892
        %v1155 = vpop.f32.mrb[0].mxu0
        %v1156 = vadd.f32 0.0, %v1155
        %v1157 = vpop.f32.mrb[0].mxu0
        %1158 = vmatprep.mubr.f32.mxu0 %v900
        %1159 = vmatmul.mubr.f32.gmra.mrb[0].mxu0 %v898
        %v1160 = vpop.f32.mrb[0].mxu0
        %v1161 = vadd.f32 0.0, %v1160
        %v1162 = vpop.f32.mrb[0].mxu0
        %1163 = vmatprep.mubr.f32.mxu0 %v906
        %1164 = vmatmul.mubr.f32.gmra.mrb[0].mxu0 %v904
        %v1165 = vpop.f32.mrb[0].mxu0
        %v1166 = vadd.f32 0.0, %v1165
        %v1167 = vpop.f32.mrb[0].mxu0
        %1168 = vmatprep.mubr.f32.mxu0 %v912
        %1169 = vmatmul.mubr.f32.gmra.mrb[0].mxu0 %v910
        %v1170 = vpop.f32.mrb[0].mxu0
        %v1171 = vadd.f32 0.0, %v1170
        %v1172 = vpop.f32.mrb[0].mxu0
        %1173 = vmatprep.mubr.f32.mxu0 %v918
        %1174 = vmatmul.mubr.f32.gmra.mrb[0].mxu0 %v916
        %v1175 = vpop.f32.mrb[0].mxu0
        %v1176 = vadd.f32 0.0, %v1175
        %v1177 = vpop.f32.mrb[0].mxu0
        %1178 = vmatprep.mubr.f32.mxu0 %v924
        %1179 = vmatmul.mubr.f32.gmra.mrb[0].mxu0 %v922
        %v1180 = vpop.f32.mrb[0].mxu0
        %v1181 = vadd.f32 0.0, %v1180
        %v1182 = vpop.f32.mrb[0].mxu0
        %1183 = vdwg.mxu0
        %1184 = vmatprep.subr.mxu0 0.0
        %1185 = vmatpush1.msra.mxu0 %v1023
        %1186 = vmatprep.subr.mxu0 0.0
        %1187 = vmatpush1.msra.mxu0 %v1024
        %1188 = vmatprep.subr.mxu0 0.0
        %1189 = vmatpush1.msra.mxu0 %v1025
        %1190 = vmatprep.subr.mxu0 0.0
        %1191 = vmatpush1.msra.mxu0 %v1026
        %1192 = vmatprep.subr.mxu0 0.0
        %1193 = vmatpush1.msra.mxu0 %v1027
        %1194 = vmatprep.subr.mxu0 0.0
        %1195 = vmatpush1.msra.mxu0 %v1028
        %1196 = vmatprep.subr.mxu0 0.0
        %1197 = vmatpush1.msra.mxu0 %v1029
        %1198 = vmatprep.subr.mxu0 0.0
        %1199 = vmatpush1.msra.mxu0 %v1030
        %1200 = vmatprep.subr.mxu0 0.0
        %1201 = vmatpush1.msra.mxu0 %v1031
        %1202 = vmatprep.subr.mxu0 0.0
        %1203 = vmatpush1.msra.mxu0 %v1032
        %1204 = vmatprep.subr.mxu0 0.0
        %1205 = vmatpush1.msra.mxu0 %v1033
        %1206 = vmatprep.subr.mxu0 0.0
        %1207 = vmatpush1.msra.mxu0 %v1034
        %1208 = vmatprep.subr.mxu0 0.0
        %1209 = vmatpush1.msra.mxu0 %v1035
        %1210 = vmatprep.subr.mxu0 0.0
        %1211 = vmatpush1.msra.mxu0 %v1036
        %1212 = vmatprep.subr.mxu0 0.0
        %1213 = vmatpush1.msra.mxu0 %v1037
        %1214 = vmatprep.subr.mxu0 0.0
        %1215 = vmatpush1.msra.mxu0 %v1038
        %1216 = vmatprep.subr.mxu0 0.0
        %1217 = vmatpush1.msra.mxu0 0.0
        %1218 = vmatprep.subr.mxu0 0.0
        %1219 = vmatpush1.msra.mxu0 0.0
        %1220 = vmatprep.subr.mxu0 0.0
        %1221 = vmatpush1.msra.mxu0 0.0
        %1222 = vmatprep.subr.mxu0 0.0
        %1223 = vmatpush1.msra.mxu0 0.0
        %1224 = vmatprep.subr.mxu0 0.0
        %1225 = vmatpush1.msra.mxu0 0.0
        %1226 = vmatprep.subr.mxu0 0.0
        %1227 = vmatpush1.msra.mxu0 0.0
        %1228 = vmatprep.subr.mxu0 0.0
        %1229 = vmatpush1.msra.mxu0 0.0
        %1230 = vmatprep.subr.mxu0 0.0
        %1231 = vmatpush1.msra.mxu0 0.0
        %1232 = vmatprep.subr.mxu0 0.0
        %1233 = vmatpush1.msra.mxu0 0.0
        %1234 = vmatprep.subr.mxu0 0.0
        %1235 = vmatpush1.msra.mxu0 0.0
        %1236 = vmatprep.subr.mxu0 0.0
        %1237 = vmatpush1.msra.mxu0 0.0
        %1238 = vmatprep.subr.mxu0 0.0
        %1239 = vmatpush1.msra.mxu0 0.0
        %1240 = vmatprep.subr.mxu0 0.0
        %1241 = vmatpush1.msra.mxu0 0.0
        %1242 = vmatprep.subr.mxu0 0.0
        %1243 = vmatpush1.msra.mxu0 0.0
        %1244 = vmatprep.subr.mxu0 0.0
        %1245 = vmatpush1.msra.mxu0 0.0
        %1246 = vmatprep.subr.mxu0 0.0
        %1247 = vmatpush1.msra.mxu0 0.0
        %1248 = vmatprep.mubr.f32.mxu0 0.0
        %1249 = vmatmul.mubr.f32.gmra.mrb[0].mxu0 %v836
        %v1250 = vpop.f32.mrb[0].mxu0
        %v1251 = vadd.f32 %v1106, %v1250
        %v1252 = vpop.f32.mrb[0].mxu0
        %1253 = vmatprep.mubr.f32.mxu0 0.0
        %1254 = vmatmul.mubr.f32.gmra.mrb[0].mxu0 %v842
        %v1255 = vpop.f32.mrb[0].mxu0
        %v1256 = vadd.f32 %v1111, %v1255
        %v1257 = vpop.f32.mrb[0].mxu0
        %1258 = vmatprep.mubr.f32.mxu0 0.0
        %1259 = vmatmul.mubr.f32.gmra.mrb[0].mxu0 %v848
        %v1260 = vpop.f32.mrb[0].mxu0
        %v1261 = vadd.f32 %v1116, %v1260
        %v1262 = vpop.f32.mrb[0].mxu0
        %1263 = vmatprep.mubr.f32.mxu0 0.0
        %1264 = vmatmul.mubr.f32.gmra.mrb[0].mxu0 %v854
        %v1265 = vpop.f32.mrb[0].mxu0
        %v1266 = vadd.f32 %v1121, %v1265
        %v1267 = vpop.f32.mrb[0].mxu0
        %1268 = vmatprep.mubr.f32.mxu0 0.0
        %1269 = vmatmul.mubr.f32.gmra.mrb[0].mxu0 %v860
        %v1270 = vpop.f32.mrb[0].mxu0
        %v1271 = vadd.f32 %v1126, %v1270
        %v1272 = vpop.f32.mrb[0].mxu0
        %1273 = vmatprep.mubr.f32.mxu0 0.0
        %1274 = vmatmul.mubr.f32.gmra.mrb[0].mxu0 %v866
        %v1275 = vpop.f32.mrb[0].mxu0
        %v1276 = vadd.f32 %v1131, %v1275
        %v1277 = vpop.f32.mrb[0].mxu0
        %1278 = vmatprep.mubr.f32.mxu0 0.0
        %1279 = vmatmul.mubr.f32.gmra.mrb[0].mxu0 %v872
        %v1280 = vpop.f32.mrb[0].mxu0
        %v1281 = vadd.f32 %v1136, %v1280
        %v1282 = vpop.f32.mrb[0].mxu0
        %1283 = vmatprep.mubr.f32.mxu0 0.0
        %1284 = vmatmul.mubr.f32.gmra.mrb[0].mxu0 %v878
        %v1285 = vpop.f32.mrb[0].mxu0
        %v1286 = vadd.f32 %v1141, %v1285
        %v1287 = vpop.f32.mrb[0].mxu0
        %1288 = vmatprep.mubr.f32.mxu0 0.0
        %1289 = vmatmul.mubr.f32.gmra.mrb[0].mxu0 %v884
        %v1290 = vpop.f32.mrb[0].mxu0
        %v1291 = vadd.f32 %v1146, %v1290
        %v1292 = vpop.f32.mrb[0].mxu0
        %1293 = vmatprep.mubr.f32.mxu0 0.0
        %1294 = vmatmul.mubr.f32.gmra.mrb[0].mxu0 %v890
        %v1295 = vpop.f32.mrb[0].mxu0
        %v1296 = vadd.f32 %v1151, %v1295
        %v1297 = vpop.f32.mrb[0].mxu0
        %1298 = vmatprep.mubr.f32.mxu0 0.0
        %1299 = vmatmul.mubr.f32.gmra.mrb[0].mxu0 %v896
        %v1300 = vpop.f32.mrb[0].mxu0
        %v1301 = vadd.f32 %v1156, %v1300
        %v1302 = vpop.f32.mrb[0].mxu0
        %1303 = vmatprep.mubr.f32.mxu0 0.0
        %1304 = vmatmul.mubr.f32.gmra.mrb[0].mxu0 %v902
        %v1305 = vpop.f32.mrb[0].mxu0
        %v1306 = vadd.f32 %v1161, %v1305
        %v1307 = vpop.f32.mrb[0].mxu0
        %1308 = vmatprep.mubr.f32.mxu0 0.0
        %1309 = vmatmul.mubr.f32.gmra.mrb[0].mxu0 %v908
        %v1310 = vpop.f32.mrb[0].mxu0
        %v1311 = vadd.f32 %v1166, %v1310
        %v1312 = vpop.f32.mrb[0].mxu0
        %1313 = vmatprep.mubr.f32.mxu0 0.0
        %1314 = vmatmul.mubr.f32.gmra.mrb[0].mxu0 %v914
        %v1315 = vpop.f32.mrb[0].mxu0
        %v1316 = vadd.f32 %v1171, %v1315
        %v1317 = vpop.f32.mrb[0].mxu0
        %1318 = vmatprep.mubr.f32.mxu0 0.0
        %1319 = vmatmul.mubr.f32.gmra.mrb[0].mxu0 %v920
        %v1320 = vpop.f32.mrb[0].mxu0
        %v1321 = vadd.f32 %v1176, %v1320
        %v1322 = vpop.f32.mrb[0].mxu0
        %1323 = vmatprep.mubr.f32.mxu0 0.0
        %1324 = vmatmul.mubr.f32.gmra.mrb[0].mxu0 %v926
        %v1325 = vpop.f32.mrb[0].mxu0
        %v1326 = vadd.f32 %v1181, %v1325
        %v1327 = vpop.f32.mrb[0].mxu0
        %1328 = vdwg.mxu0
        %v1329 = vrcp.pop %v930
        %v1330 = vrcp.pop %v934
        %v1331 = vrcp.pop %v938
        %v1332 = vrcp.pop %v942
        %v1333 = vrcp.pop %v946
        %v1334 = vrcp.pop %v950
        %v1335 = vrcp.pop %v954
        %v1336 = vrcp.pop %v958
        %v1337 = vrcp.pop %v962
        %v1338 = vrcp.pop %v966
        %v1339 = vrcp.pop %v970
        %v1340 = vrcp.pop %v974
        %v1341 = vrcp.pop %v978
        %v1342 = vrcp.pop %v982
        %v1343 = vrcp.pop %v986
        %v1344 = vrcp.pop %v990
        %v1345 = vmul.f32 %v1251, %v1329
        %v1346 = vmul.f32 %v1256, %v1330
        %v1347 = vmul.f32 %v1261, %v1331
        %v1348 = vmul.f32 %v1266, %v1332
        %v1349 = vmul.f32 %v1271, %v1333
        %v1350 = vmul.f32 %v1276, %v1334
        %v1351 = vmul.f32 %v1281, %v1335
        %v1352 = vmul.f32 %v1286, %v1336
        %v1353 = vmul.f32 %v1291, %v1337
        %v1354 = vmul.f32 %v1296, %v1338
        %v1355 = vmul.f32 %v1301, %v1339
        %v1356 = vmul.f32 %v1306, %v1340
        %v1357 = vmul.f32 %v1311, %v1341
        %v1358 = vmul.f32 %v1316, %v1342
        %v1359 = vmul.f32 %v1321, %v1343
        %v1360 = vmul.f32 %v1326, %v1344
        %1361 = vst [vmem:[%s247] sm:$0xff] %v1345
        %1362 = vst [vmem:[%s247 + $0x8] sm:$0xff] %v1346
        %1363 = vst [vmem:[%s247 + $0x10] sm:$0xff] %v1347
        %1364 = vst [vmem:[%s247 + $0x18] sm:$0xff] %v1348
        %1365 = vst [vmem:[%s247 + $0x20] sm:$0xff] %v1349
        %1366 = vst [vmem:[%s247 + $0x28] sm:$0xff] %v1350
        %1367 = vst [vmem:[%s247 + $0x30] sm:$0xff] %v1351
        %1368 = vst [vmem:[%s247 + $0x38] sm:$0xff] %v1352
        %1369 = vst [vmem:[%s247 + $0x40] sm:$0xff] %v1353
        %1370 = vst [vmem:[%s247 + $0x48] sm:$0xff] %v1354
        %1371 = vst [vmem:[%s247 + $0x50] sm:$0xff] %v1355
        %1372 = vst [vmem:[%s247 + $0x58] sm:$0xff] %v1356
        %1373 = vst [vmem:[%s247 + $0x60] sm:$0xff] %v1357
        %1374 = vst [vmem:[%s247 + $0x68] sm:$0xff] %v1358
        %1375 = vst [vmem:[%s247 + $0x70] sm:$0xff] %v1359
        %1376 = vst [vmem:[%s247 + $0x78] sm:$0xff] %v1360
        %s1377 = sand.u32 %s124, 1
        %s1378 = scalar_lea.sflag [#allocation4], %s1377
        %s1379 = sand.u32 %s124, 1
        %s1380 = smul.addr %s1379, 128
        %s1381 = scalar_lea.vmem [#allocation7], %s1380
        // Predicated region
        $region45: #{attention.1} parent=35 // pred_check
          %p1382 = pneg %p134
        $region46: #{attention.1} parent=35 // pred_check_branch
          %1384 = sbr.rel (%p1382) target = $region48
        $region47: #{attention.1} parent=35 // pred_region
          %s1385 = smul.u32 16, %s22
          %s1387 = ssub.s32 2048, 2048
          %1388 = vsyncadd %s1378, %s1387
          %s1389 = smul.addr %s1385, 128
          %s1390 = scalar_lea.hbm %s4, %s1389
          %s1391 = sshll.u32 %s1381, 4
          %s1392 = int_to_ptr.vmem [resolvable:$true] %s1391
          %1397 = dma.vmem_to_hbm [thread:$0]  %s1392, 2048, %s1390, %s1378, 128, 128, 8
        $region48: #{attention.1} parent=35 // pred_fallthru
          _
      $region36: #{attention.1} parent=5 // pred_fallthru
        _
      %p1398 = scmp.le.s32.totalorder 2, %s17
      // Predicated region
      $region49: #{attention.1} parent=5 // pred_check
        %p1399 = pneg %p1398
      $region50: #{attention.1} parent=5 // pred_check_branch
        %1401 = sbr.rel (%p1399) target = $region52
      $region51: #{attention.1} parent=5 // pred_region
        %s1402 = ssub.s32 %s17, 2
        // Predicated region
        $region53: #{attention.1} parent=51 // pred_check
          %p1403 = pneg %p140
        $region54: #{attention.1} parent=51 // pred_check_branch
          %1405 = sbr.rel (%p1403) target = $region56
        $region55: #{attention.1} parent=51 // pred_region
          %s1406 = sand.u32 %s125, 1
          %s1407 = scalar_lea.sflag [#allocation4], %s1406
          %s1408 = sand.u32 %s125, 1
          %s1409 = smul.addr %s1408, 128
          %s1410 = scalar_lea.vmem [#allocation7], %s1409
          %1411 = dma.done %s1407, 2048
        $region56: #{attention.1} parent=51 // pred_fallthru
          _
      $region52: #{attention.1} parent=5 // pred_fallthru
        _
    $region6: #{attention.1} parent=1 // loop_footer
      %s21 = sadd.s32 1, %s17
    $region7: #{attention.1} parent=1 // loop_footer_branch
      %16 = sbr.rel target = $region3
    $region8: #{attention.1} parent=1 // loop_exit
      _
    %1412 = vsyncpa [#allocation3], 1
    %s1413 = scalar_lea.sflag [#allocation3], 1
    %1414 = vsyncpa %s1413, 1
    %1415 = vsyncpa [#allocation6], 1
    %s1416 = scalar_lea.sflag [#allocation6], 1
    %1417 = vsyncpa %s1416, 1
    %1418 = vsyncpa [#allocation4], 1
    %s1419 = scalar_lea.sflag [#allocation4], 1
    %1420 = vsyncpa %s1419, 1

</llo_original>
